<compile_context>
chip_gen: v7x
topology: tpu7x:2x2x1
jax: 0.10.0
libtpu: 0.0.40
codegen_flags: <defaults>
</compile_context>

<pallas_src>
import functools
import math

import jax
import jax.numpy as jnp
from jax import lax
from jax.experimental import pallas as pl
from jax.experimental.pallas import tpu as pltpu

EPS = 1e-6
_MIB = 1024 * 1024


# --------------------------------------------------------------------------- #
# Kernel
# --------------------------------------------------------------------------- #
def _layernorm_kernel(alpha_ref, bias_ref, x_ref, o_ref, *, eps, hidden, groups,
                      approx):
    """x_ref/o_ref: (TR, W) VMEM tiles, W = groups*hidden; alpha/bias: (1,) SMEM."""
    xf = x_ref[...].astype(jnp.float32)
    alpha = alpha_ref[0].astype(jnp.float32)
    bias = bias_ref[0].astype(jnp.float32)
    eps_f = jnp.float32(eps)
    inv_n = jnp.float32(1.0 / hidden)
    # Unbiased (N-1) variance, matching torch.std's default.  hidden == 1 gives
    # 0 * inf = NaN, exactly like torch.std of a single element.
    inv_nm1 = jnp.float32(1.0 / (hidden - 1)) if hidden > 1 else jnp.float32(jnp.inf)

    if groups == 1:
        # hidden spans the lanes directly: plain per-row reductions.
        mean = jnp.sum(xf, axis=-1, keepdims=True) * inv_n
        d = xf - mean
        std = jnp.sqrt(jnp.sum(d * d, axis=-1, keepdims=True) * inv_nm1)
        # One EUP reciprocal per row, then a single fused mul-add per element.
        scale = alpha * pl.reciprocal(std + eps_f, approx=approx)
        o_ref[...] = (d * scale + bias).astype(o_ref.dtype)
        return

    # Lane-dense packed path (hidden < 128): each physical row holds `groups`
    # logical rows.  Segment statistics via tiny full-precision MXU matmuls
    # against a 0/1 segment matrix; vector data stays in native (8,128) layout.
    width = groups * hidden
    lane = lax.broadcasted_iota(jnp.int32, (width, groups), 0)
    seg = lax.broadcasted_iota(jnp.int32, (width, groups), 1)
    off = lane - seg * hidden
    s_mat = ((off >= 0) & (off < hidden)).astype(jnp.float32)          # (W, G)
    lane_t = lax.broadcasted_iota(jnp.int32, (groups, width), 1)
    seg_t = lax.broadcasted_iota(jnp.int32, (groups, width), 0)
    off_t = lane_t - seg_t * hidden
    s_mat_t = ((off_t >= 0) & (off_t < hidden)).astype(jnp.float32)    # (G, W)

    dot = functools.partial(jnp.dot, preferred_element_type=jnp.float32,
                            precision=lax.Precision.HIGHEST)
    mean = dot(xf, s_mat) * inv_n                  # (TR, G) per-segment means
    d = xf - dot(mean, s_mat_t)                    # (TR, W) centered
    std = jnp.sqrt(dot(d * d, s_mat) * inv_nm1)    # (TR, G)
    scale = alpha * pl.reciprocal(std + eps_f, approx=approx)          # (TR, G)
    o_ref[...] = (d * dot(scale, s_mat_t) + bias).astype(o_ref.dtype)


# --------------------------------------------------------------------------- #
# Tiling helpers
# --------------------------------------------------------------------------- #
def _vmem_capacity_bytes():
    try:
        cap = int(pltpu.get_tpu_info().vmem_capacity_bytes)
        if cap > 0:
            return cap
    except Exception:
        pass
    return 64 * _MIB  # conservative fallback: v7x per-TensorCore VMEM


def _pack_factor(rows, hidden):
    """Logical rows per physical row so the stored last dim is a multiple of 128."""
    if hidden >= 128 or hidden < 1:
        return 1
    g = 128 // math.gcd(hidden, 128)
    if g <= 1 or g * hidden > 1024 or rows % g != 0:
        # TODO(synk): rows % g != 0 could still pack with a tiny row pad, but a
        # jnp.pad copies the whole tensor through HBM, defeating the purpose.
        return 1
    return g


def _choose_row_tile(rows_k, width, itemsize):
    """Byte-targeted, VMEM-budgeted row tile.  Returns (tile, pack)."""
    pack = 32 // itemsize if itemsize < 4 else 8   # sublane packing granularity
    # Keep well under per-core VMEM even on v7x (64 MiB/core); v5e/v6e (128 MiB)
    # are strictly safer.  Also guards against get_tpu_info reporting per-chip.
    vmem_budget = min(_vmem_capacity_bytes() * 3 // 4, 48 * _MIB)
    # Per row: in + out double-buffered in the I/O dtype + ~4 f32 temporaries.
    per_row = width * (4 * itemsize + 16)
    tile_by_budget = vmem_budget // max(per_row, 1)
    # ~6 MiB of input per grid step: per-step overhead (~0.35 us) stays
    # negligible even at v7x's ~3.2 TB/s HBM, and it fits the VMEM budget.
    tile_by_bytes = (6 * _MIB) // max(width * itemsize, 1)

    tile = max(pack, min(tile_by_budget, tile_by_bytes))
    tile = max(pack, (tile // pack) * pack)

    if tile >= rows_k:
        if rows_k >= 2 * pack:
            # A single block would cover everything: split into >=2 'parallel'
            # grid steps so both v7x TensorCores get work (no cost on v5e/v6e).
            half = (rows_k + 1) // 2
            tile = min(rows_k, ((half + pack - 1) // pack) * pack)
        else:
            tile = rows_k          # block == full array dims (no alignment rule)
    return int(tile), pack


def _vmem_limit_for(tile, width, itemsize):
    """Scoped-VMEM limit covering the pipelined working set, and block byte size."""
    block_io = tile * width * itemsize
    needed = 4 * block_io + 4 * tile * width * 4   # 2x-buffered I/O + f32 temps
    limit = min(max(needed * 5 // 4, 32 * _MIB), 48 * _MIB)
    # TODO(synk): for pathological hidden (>~100K f32/row on v7x) the minimum
    # pack-row tile exceeds this budget; a hidden-split ('arbitrary' second grid
    # axis with running sum/sum-sq scratch) would be needed instead.
    limit = min(max(limit, needed * 9 // 8), _vmem_capacity_bytes() * 3 // 4)
    return int(max(limit, 32 * _MIB)), block_io


def _io_block_spec(shape, index_map, depth):
    if depth > 2 and hasattr(pl, "Buffered"):
        try:
            return pl.BlockSpec(shape, index_map, pipeline_mode=pl.Buffered(depth))
        except TypeError:
            pass
    return pl.BlockSpec(shape, index_map)


# --------------------------------------------------------------------------- #
# Wrapper
# --------------------------------------------------------------------------- #
def layer_normalization(x, alpha, bias, *, eps=EPS, row_tile=None):
    """x: (..., H); alpha, bias: shape (1,). Returns same shape/dtype as x."""
    orig_shape = x.shape
    hidden = int(orig_shape[-1])
    rows = int(math.prod(orig_shape[:-1]))
    itemsize = jnp.dtype(x.dtype).itemsize

    # Pack G logical rows per physical row when hidden < 128 so loads/stores are
    # lane-dense.  This reshape is free (contiguous, no copy).
    groups = _pack_factor(rows, hidden)
    width = groups * hidden
    rows_k = rows // groups
    xk = x.reshape(rows_k, width)

    tile, pack = _choose_row_tile(rows_k, width, itemsize)
    if row_tile is not None:
        tile = max(1, min(int(row_tile), rows_k))
        if tile < rows_k:
            tile = max(pack, (tile // pack) * pack)   # keep sublane alignment
    vmem_limit, block_io = _vmem_limit_for(tile, width, itemsize)
    n_tiles = pl.cdiv(rows_k, tile)

    # Small blocks leave DMA-issue latency exposed under the default depth-2
    # pipeline; a third buffer hides it for almost no VMEM at these sizes.
    depth = 3 if (block_io < 2 * _MIB and n_tiles >= 3) else 2

    approx = jnp.dtype(x.dtype) in (jnp.dtype(jnp.bfloat16), jnp.dtype(jnp.float16))
    kernel = functools.partial(_layernorm_kernel, eps=eps, hidden=hidden,
                               groups=groups, approx=approx)

    cost = pl.CostEstimate(
        flops=8 * rows * hidden,
        transcendentals=2 * rows,                      # sqrt + reciprocal per row
        bytes_accessed=2 * rows * hidden * itemsize,   # purely HBM-bound op
    )

    out = pl.pallas_call(
        kernel,
        out_shape=jax.ShapeDtypeStruct((rows_k, width), x.dtype),
        grid=(n_tiles,),
        in_specs=[
            pl.BlockSpec(memory_space=pltpu.MemorySpace.SMEM),   # alpha (1,)
            pl.BlockSpec(memory_space=pltpu.MemorySpace.SMEM),   # bias  (1,)
            _io_block_spec((tile, width), lambda i: (i, 0), depth),
        ],
        out_specs=_io_block_spec((tile, width), lambda i: (i, 0), depth),
        compiler_params=pltpu.CompilerParams(
            dimension_semantics=("parallel",),
            vmem_limit_bytes=vmem_limit,
        ),
        cost_estimate=cost,
    )(alpha, bias, xk)

    # Ragged final tile: Pallas masks the out-of-range row stores, and rows are
    # independent, so no HBM-level pad/slice is required.
    return out.reshape(orig_shape)


# --------------------------------------------------------------------------- #
# Reference & self-test
# --------------------------------------------------------------------------- #
def _reference(x, alpha, bias, eps=EPS):
    x32 = x.astype(jnp.float32)
    mean = jnp.mean(x32, axis=-1, keepdims=True)
    var = jnp.sum((x32 - mean) ** 2, axis=-1, keepdims=True) / max(x.shape[-1] - 1, 1)
    std = jnp.sqrt(var)
    return (alpha[0] * (x32 - mean) / (std + eps) + bias[0]).astype(x.dtype)


if __name__ == "__main__":
    key = jax.random.PRNGKey(0)
    batch, seq, hidden = 2, 8, 32
    x = jax.random.normal(key, (batch, seq, hidden), dtype=jnp.float32)

    # Deterministic params matching nn.Parameter(torch.ones(1) / torch.zeros(1)).
    alpha = jnp.ones((1,), dtype=jnp.float32)
    bias = jnp.zeros((1,), dtype=jnp.float32)

    # 1) Spec-sized input: exercises the lane-dense packed path (hidden=32, G=4).
    y = jax.block_until_ready(layer_normalization(x, alpha, bias))
    y_ref = _reference(x, alpha, bias)
    assert y.shape == x.shape and y.dtype == x.dtype
    assert jnp.allclose(y, y_ref, atol=2e-5, rtol=2e-5)

    # 2) Awkward row count (15 rows): unpacked path, single full-array block.
    x_odd = jax.random.normal(jax.random.PRNGKey(1), (3, 5, hidden), jnp.float32)
    y_odd = jax.block_until_ready(layer_normalization(x_odd, alpha, bias))
    assert jnp.allclose(y_odd, _reference(x_odd, alpha, bias), atol=2e-5, rtol=2e-5)

    # 3) Multi-tile grid with a ragged last block (forced small row_tile):
    #    validates the no-pad edge-block handling + packed path + deeper pipeline.
    x_big = jax.random.normal(jax.random.PRNGKey(2), (4, 50, 64), jnp.float32)
    y_big = jax.block_until_ready(layer_normalization(x_big, alpha, bias, row_tile=16))
    assert jnp.allclose(y_big, _reference(x_big, alpha, bias), atol=2e-5, rtol=2e-5)

    print("KERNEL_OK")
</pallas_src>

<mosaic_0001>
module attributes {stable_mosaic.version = 11 : i64} {
  func.func @_layernorm_kernel(%arg0: i32, %arg1: memref<1xf32, #tpu.memory_space<smem>>, %arg2: memref<1xf32, #tpu.memory_space<smem>>, %arg3: memref<4x128xf32, #tpu.memory_space<vmem>>, %arg4: memref<4x128xf32, #tpu.memory_space<vmem>>) attributes {dimension_semantics = [#tpu.dimension_semantics<parallel>], iteration_bounds = array<i64: 1>, scalar_prefetch = 0 : i64, scratch_operands = 0 : i64, tpu.core_type = #tpu.core_type<tc>, window_params = [{transform_indices = @transform_0, window_bounds = array<i64: 1>}, {transform_indices = @transform_1, window_bounds = array<i64: 1>}, {transform_indices = @transform_2, window_bounds = array<i64: 4, 128>}, {transform_indices = @transform_3, window_bounds = array<i64: 4, 128>}]} {
    %c0 = arith.constant 0 : index
    %c0_0 = arith.constant 0 : index
    %0 = vector.load %arg3[%c0, %c0_0] : memref<4x128xf32, #tpu.memory_space<vmem>>, vector<4x128xf32>
    %c0_1 = arith.constant 0 : index
    %1 = memref.load %arg1[%c0_1] : memref<1xf32, #tpu.memory_space<smem>>
    %c0_2 = arith.constant 0 : index
    %2 = memref.load %arg2[%c0_2] : memref<1xf32, #tpu.memory_space<smem>>
    %3 = tpu.iota {dimensions = array<i32: 0>} : vector<128x4xi32>
    %4 = tpu.iota {dimensions = array<i32: 1>} : vector<128x4xi32>
    %c32_i32 = arith.constant 32 : i32
    %5 = vector.broadcast %c32_i32 : i32 to vector<128x4xi32>
    %6 = arith.muli %4, %5 : vector<128x4xi32>
    %7 = arith.subi %3, %6 : vector<128x4xi32>
    %c0_i32 = arith.constant 0 : i32
    %8 = vector.broadcast %c0_i32 : i32 to vector<128x4xi32>
    %9 = arith.cmpi sge, %7, %8 : vector<128x4xi32>
    %c32_i32_3 = arith.constant 32 : i32
    %10 = vector.broadcast %c32_i32_3 : i32 to vector<128x4xi32>
    %11 = arith.cmpi slt, %7, %10 : vector<128x4xi32>
    %12 = arith.andi %9, %11 : vector<128x4xi1>
    %13 = arith.extui %12 : vector<128x4xi1> to vector<128x4xi32>
    %14 = arith.sitofp %13 : vector<128x4xi32> to vector<128x4xf32>
    %15 = tpu.iota {dimensions = array<i32: 1>} : vector<4x128xi32>
    %16 = tpu.iota {dimensions = array<i32: 0>} : vector<4x128xi32>
    %c32_i32_4 = arith.constant 32 : i32
    %17 = vector.broadcast %c32_i32_4 : i32 to vector<4x128xi32>
    %18 = arith.muli %16, %17 : vector<4x128xi32>
    %19 = arith.subi %15, %18 : vector<4x128xi32>
    %c0_i32_5 = arith.constant 0 : i32
    %20 = vector.broadcast %c0_i32_5 : i32 to vector<4x128xi32>
    %21 = arith.cmpi sge, %19, %20 : vector<4x128xi32>
    %c32_i32_6 = arith.constant 32 : i32
    %22 = vector.broadcast %c32_i32_6 : i32 to vector<4x128xi32>
    %23 = arith.cmpi slt, %19, %22 : vector<4x128xi32>
    %24 = arith.andi %21, %23 : vector<4x128xi1>
    %25 = arith.extui %24 : vector<4x128xi1> to vector<4x128xi32>
    %26 = arith.sitofp %25 : vector<4x128xi32> to vector<4x128xf32>
    %cst = arith.constant dense<0.000000e+00> : vector<4x4xf32>
    %27 = tpu.matmul %0, %14, %cst {dimension_numbers = #tpu.dot_dimension_numbers<[1], [0], [0], [1], [0, 0, 1, 1], [], []>, precision = #tpu.contract_precision<fp32>} : vector<4x128xf32>, vector<128x4xf32>, vector<4x4xf32> -> vector<4x4xf32>
    %cst_7 = arith.constant 3.125000e-02 : f32
    %28 = vector.broadcast %cst_7 : f32 to vector<4x4xf32>
    %29 = arith.mulf %27, %28 : vector<4x4xf32>
    %cst_8 = arith.constant dense<0.000000e+00> : vector<4x128xf32>
    %30 = tpu.matmul %29, %26, %cst_8 {dimension_numbers = #tpu.dot_dimension_numbers<[1], [0], [0], [1], [0, 0, 1, 1], [], []>, precision = #tpu.contract_precision<fp32>} : vector<4x4xf32>, vector<4x128xf32>, vector<4x128xf32> -> vector<4x128xf32>
    %31 = arith.subf %0, %30 : vector<4x128xf32>
    %32 = arith.mulf %31, %31 : vector<4x128xf32>
    %cst_9 = arith.constant dense<0.000000e+00> : vector<4x4xf32>
    %33 = tpu.matmul %32, %14, %cst_9 {dimension_numbers = #tpu.dot_dimension_numbers<[1], [0], [0], [1], [0, 0, 1, 1], [], []>, precision = #tpu.contract_precision<fp32>} : vector<4x128xf32>, vector<128x4xf32>, vector<4x4xf32> -> vector<4x4xf32>
    %cst_10 = arith.constant 0.0322580636 : f32
    %34 = vector.broadcast %cst_10 : f32 to vector<4x4xf32>
    %35 = arith.mulf %33, %34 : vector<4x4xf32>
    %36 = math.sqrt %35 : vector<4x4xf32>
    %cst_11 = arith.constant 9.99999997E-7 : f32
    %37 = vector.broadcast %cst_11 : f32 to vector<4x4xf32>
    %38 = arith.addf %36, %37 : vector<4x4xf32>
    %39 = tpu.reciprocal %38 : vector<4x4xf32> -> vector<4x4xf32>
    %40 = vector.broadcast %1 : f32 to vector<4x4xf32>
    %41 = arith.mulf %40, %39 : vector<4x4xf32>
    %cst_12 = arith.constant dense<0.000000e+00> : vector<4x128xf32>
    %42 = tpu.matmul %41, %26, %cst_12 {dimension_numbers = #tpu.dot_dimension_numbers<[1], [0], [0], [1], [0, 0, 1, 1], [], []>, precision = #tpu.contract_precision<fp32>} : vector<4x4xf32>, vector<4x128xf32>, vector<4x128xf32> -> vector<4x128xf32>
    %43 = arith.mulf %31, %42 : vector<4x128xf32>
    %44 = vector.broadcast %2 : f32 to vector<4x128xf32>
    %45 = arith.addf %43, %44 : vector<4x128xf32>
    %c0_13 = arith.constant 0 : index
    %c0_14 = arith.constant 0 : index
    %46 = vector.load %arg4[%c0_13, %c0_14] : memref<4x128xf32, #tpu.memory_space<vmem>>, vector<4x128xf32>
    tpu.vector_store %arg4[%c0_13, %c0_14], %45 {strides = array<i32>} : memref<4x128xf32, #tpu.memory_space<vmem>>, vector<4x128xf32>,
    return
  }
  func.func @transform_0(%arg0: i32) -> i32 {
    %c0_i32 = arith.constant 0 : i32
    %c0_i32_0 = arith.constant 0 : i32
    return %c0_i32 : i32
  }
  func.func @transform_1(%arg0: i32) -> i32 {
    %c0_i32 = arith.constant 0 : i32
    %c0_i32_0 = arith.constant 0 : i32
    return %c0_i32 : i32
  }
  func.func @transform_2(%arg0: i32) -> (i32, i32) {
    %c0_i32 = arith.constant 0 : i32
    %c0_i32_0 = arith.constant 0 : i32
    return %arg0, %c0_i32 : i32, i32
  }
  func.func @transform_3(%arg0: i32) -> (i32, i32) {
    %c0_i32 = arith.constant 0 : i32
    %c0_i32_0 = arith.constant 0 : i32
    return %arg0, %c0_i32 : i32, i32
  }
}

</mosaic_0001>

<llo_original>
// kernel: tpu_custom_call.1
$region0: #{tpu_custom_call.1}
  #allocation0 [shape = 'u32[]', space=smem, size = 0x4, offset = 0x4, fixed_abs, tag = 'smem constant byte address 0x4 - core index']
  #allocation1 [shape = 'u32[144,128]{1,0:T(1,128)}', space=vmem, size = 0x12000, scoped, tag = 'internal scratch']
  #allocation2 [shape = 'f32[1]{0:T(128)S(6)}', space=smem, size = 0x200, scoped, tag = 'scoped memory for tpu_custom_call.1']
  #allocation3 [shape = 'f32[1]{0:T(128)S(6)}', space=smem, size = 0x200, scoped, tag = 'scoped memory for tpu_custom_call.1']
  %s0 = inlined_call_operand.<no memory space> [shape: f32[1], index: 0, kind: input, shape index: {}]
  %s1 = inlined_call_operand.<no memory space> [shape: f32[1], index: 1, kind: input, shape index: {}]
  %s2 = inlined_call_operand.vmem [shape: f32[4,128], index: 2, kind: input, shape index: {}]
  %s3 = inlined_call_operand.hbm [shape: f32[4,128], index: 3, kind: output, shape index: {}]
  %s4 = sld [smem:[#allocation0]]
  $region22: #{tpu_custom_call.1} parent=0
    _
  %s6 = ssub.s32 1, %s4
  %s7 = scalar_select 0, %s6, %s4
  %8 = sst [smem:[#allocation2]] %s0
  %9 = sst [smem:[#allocation3]] %s1
  $region1: #{tpu_custom_call.1} parent=0
    #allocation4 [shape = 'u8[2048]{0}', space=vmem, size = 0x800, scoped, tag = 'output window, operand 0, single buffered']
    #allocation5 [shape = 's32[1]{0}', space=sflag, size = 0x4, scoped, tag = 'scoped memory for tpu_custom_call.1']
    %10 = vsyncpa [#allocation5], 0
    // Predicated region
    $region2: #{tpu_custom_call.1} parent=1 // pred_check
      _
    $region3: #{tpu_custom_call.1} parent=1 // pred_check_branch
      %12 = sbr.rel (0) target = $region5
    $region4: #{tpu_custom_call.1} parent=1 // pred_region
      _
    $region5: #{tpu_custom_call.1} parent=1 // pred_fallthru
      _
    // Predicated region
    $region6: #{tpu_custom_call.1} parent=1 // pred_check
      _
    $region7: #{tpu_custom_call.1} parent=1 // pred_check_branch
      %14 = sbr.rel (0) target = $region9
    $region8: #{tpu_custom_call.1} parent=1 // pred_region
      _
    $region9: #{tpu_custom_call.1} parent=1 // pred_fallthru
      _
    // Predicated region
    $region10: #{tpu_custom_call.1} parent=1 // pred_check
      _
    $region11: #{tpu_custom_call.1} parent=1 // pred_check_branch
      %16 = sbr.rel (0) target = $region13
    $region12: #{tpu_custom_call.1} parent=1 // pred_region
      _
    $region13: #{tpu_custom_call.1} parent=1 // pred_fallthru
      _
    %v17 = vld [vmem:[%s2] sm:$0xf]
    %s18 = sld [smem:[#allocation2]]
    %s19 = sld [smem:[#allocation3]]
    %v20 = vlaneseq
    %v21 = vshrl.u32 %v20, 7
    %v22 = vadd.s32 %v21, 8
    %v23 = vadd.s32 %v21, 16
    %v24 = vadd.s32 %v21, 24
    %v25 = vadd.s32 %v21, 32
    %v26 = vadd.s32 %v21, 40
    %v27 = vadd.s32 %v21, 48
    %v28 = vadd.s32 %v21, 56
    %v29 = vadd.s32 %v21, 64
    %v30 = vadd.s32 %v21, 72
    %v31 = vadd.s32 %v21, 80
    %v32 = vadd.s32 %v21, 88
    %v33 = vadd.s32 %v21, 96
    %v34 = vadd.s32 %v21, 104
    %v35 = vadd.s32 %v21, 112
    %v36 = vadd.s32 %v21, 120
    %v37 = vlaneseq
    %v38 = vand.u32 %v37, 127
    %v39 = vmul.u32 %v38, 32
    %v40 = vsub.s32 %v21, %v39
    %v41 = vsub.s32 %v22, %v39
    %v42 = vsub.s32 %v23, %v39
    %v43 = vsub.s32 %v24, %v39
    %v44 = vsub.s32 %v25, %v39
    %v45 = vsub.s32 %v26, %v39
    %v46 = vsub.s32 %v27, %v39
    %v47 = vsub.s32 %v28, %v39
    %v48 = vsub.s32 %v29, %v39
    %v49 = vsub.s32 %v30, %v39
    %v50 = vsub.s32 %v31, %v39
    %v51 = vsub.s32 %v32, %v39
    %v52 = vsub.s32 %v33, %v39
    %v53 = vsub.s32 %v34, %v39
    %v54 = vsub.s32 %v35, %v39
    %v55 = vsub.s32 %v36, %v39
    %vm56 = vcmp.ge.s32.totalorder %v40, 0
    %vm57 = vcmp.ge.s32.totalorder %v41, 0
    %vm58 = vcmp.ge.s32.totalorder %v42, 0
    %vm59 = vcmp.ge.s32.totalorder %v43, 0
    %vm60 = vcmp.ge.s32.totalorder %v44, 0
    %vm61 = vcmp.ge.s32.totalorder %v45, 0
    %vm62 = vcmp.ge.s32.totalorder %v46, 0
    %vm63 = vcmp.ge.s32.totalorder %v47, 0
    %vm64 = vcmp.ge.s32.totalorder %v48, 0
    %vm65 = vcmp.ge.s32.totalorder %v49, 0
    %vm66 = vcmp.ge.s32.totalorder %v50, 0
    %vm67 = vcmp.ge.s32.totalorder %v51, 0
    %vm68 = vcmp.ge.s32.totalorder %v52, 0
    %vm69 = vcmp.ge.s32.totalorder %v53, 0
    %vm70 = vcmp.ge.s32.totalorder %v54, 0
    %vm71 = vcmp.ge.s32.totalorder %v55, 0
    %vm72 = vcmp.lt.s32.totalorder %v40, 32
    %vm73 = vcmp.lt.s32.totalorder %v41, 32
    %vm74 = vcmp.lt.s32.totalorder %v42, 32
    %vm75 = vcmp.lt.s32.totalorder %v43, 32
    %vm76 = vcmp.lt.s32.totalorder %v44, 32
    %vm77 = vcmp.lt.s32.totalorder %v45, 32
    %vm78 = vcmp.lt.s32.totalorder %v46, 32
    %vm79 = vcmp.lt.s32.totalorder %v47, 32
    %vm80 = vcmp.lt.s32.totalorder %v48, 32
    %vm81 = vcmp.lt.s32.totalorder %v49, 32
    %vm82 = vcmp.lt.s32.totalorder %v50, 32
    %vm83 = vcmp.lt.s32.totalorder %v51, 32
    %vm84 = vcmp.lt.s32.totalorder %v52, 32
    %vm85 = vcmp.lt.s32.totalorder %v53, 32
    %vm86 = vcmp.lt.s32.totalorder %v54, 32
    %vm87 = vcmp.lt.s32.totalorder %v55, 32
    %vm88 = vmand %vm56, %vm72
    %vm89 = vmand %vm57, %vm73
    %vm90 = vmand %vm58, %vm74
    %vm91 = vmand %vm59, %vm75
    %vm92 = vmand %vm60, %vm76
    %vm93 = vmand %vm61, %vm77
    %vm94 = vmand %vm62, %vm78
    %vm95 = vmand %vm63, %vm79
    %vm96 = vmand %vm64, %vm80
    %vm97 = vmand %vm65, %vm81
    %vm98 = vmand %vm66, %vm82
    %vm99 = vmand %vm67, %vm83
    %vm100 = vmand %vm68, %vm84
    %vm101 = vmand %vm69, %vm85
    %vm102 = vmand %vm70, %vm86
    %vm103 = vmand %vm71, %vm87
    %v104 = vsel %vm88, 1, 0
    %v105 = vsel %vm89, 1, 0
    %v106 = vsel %vm90, 1, 0
    %v107 = vsel %vm91, 1, 0
    %v108 = vsel %vm92, 1, 0
    %v109 = vsel %vm93, 1, 0
    %v110 = vsel %vm94, 1, 0
    %v111 = vsel %vm95, 1, 0
    %v112 = vsel %vm96, 1, 0
    %v113 = vsel %vm97, 1, 0
    %v114 = vsel %vm98, 1, 0
    %v115 = vsel %vm99, 1, 0
    %v116 = vsel %vm100, 1, 0
    %v117 = vsel %vm101, 1, 0
    %v118 = vsel %vm102, 1, 0
    %v119 = vsel %vm103, 1, 0
    %v120 = vcvt.s32.f32 %v104
    %v121 = vcvt.s32.f32 %v105
    %v122 = vcvt.s32.f32 %v106
    %v123 = vcvt.s32.f32 %v107
    %v124 = vcvt.s32.f32 %v108
    %v125 = vcvt.s32.f32 %v109
    %v126 = vcvt.s32.f32 %v110
    %v127 = vcvt.s32.f32 %v111
    %v128 = vcvt.s32.f32 %v112
    %v129 = vcvt.s32.f32 %v113
    %v130 = vcvt.s32.f32 %v114
    %v131 = vcvt.s32.f32 %v115
    %v132 = vcvt.s32.f32 %v116
    %v133 = vcvt.s32.f32 %v117
    %v134 = vcvt.s32.f32 %v118
    %v135 = vcvt.s32.f32 %v119
    %v136 = vmul.u32 %v21, 32
    %v137 = vsub.s32 %v38, %v136
    %vm138 = vcmp.ge.s32.totalorder %v137, 0
    %vm139 = vcmp.lt.s32.totalorder %v137, 32
    %vm140 = vmand %vm138, %vm139
    %v141 = vsel %vm140, 1, 0
    %v142 = vcvt.s32.f32 %v141
    %143 = vmatprep.subr.mxu0 0.0
    %v144 = vand.u32 %v120, 4294901760
    %145 = vmatpush1.msra.mxu0 %v144
    %146 = vmatprep.subr.mxu0 0.0
    %v147 = vand.u32 %v121, 4294901760
    %148 = vmatpush1.msra.mxu0 %v147
    %149 = vmatprep.subr.mxu0 0.0
    %v150 = vand.u32 %v122, 4294901760
    %151 = vmatpush1.msra.mxu0 %v150
    %152 = vmatprep.subr.mxu0 0.0
    %v153 = vand.u32 %v123, 4294901760
    %154 = vmatpush1.msra.mxu0 %v153
    %155 = vmatprep.subr.mxu0 0.0
    %v156 = vand.u32 %v124, 4294901760
    %157 = vmatpush1.msra.mxu0 %v156
    %158 = vmatprep.subr.mxu0 0.0
    %v159 = vand.u32 %v125, 4294901760
    %160 = vmatpush1.msra.mxu0 %v159
    %161 = vmatprep.subr.mxu0 0.0
    %v162 = vand.u32 %v126, 4294901760
    %163 = vmatpush1.msra.mxu0 %v162
    %164 = vmatprep.subr.mxu0 0.0
    %v165 = vand.u32 %v127, 4294901760
    %166 = vmatpush1.msra.mxu0 %v165
    %167 = vmatprep.subr.mxu0 0.0
    %v168 = vand.u32 %v128, 4294901760
    %169 = vmatpush1.msra.mxu0 %v168
    %170 = vmatprep.subr.mxu0 0.0
    %v171 = vand.u32 %v129, 4294901760
    %172 = vmatpush1.msra.mxu0 %v171
    %173 = vmatprep.subr.mxu0 0.0
    %v174 = vand.u32 %v130, 4294901760
    %175 = vmatpush1.msra.mxu0 %v174
    %176 = vmatprep.subr.mxu0 0.0
    %v177 = vand.u32 %v131, 4294901760
    %178 = vmatpush1.msra.mxu0 %v177
    %179 = vmatprep.subr.mxu0 0.0
    %v180 = vand.u32 %v132, 4294901760
    %181 = vmatpush1.msra.mxu0 %v180
    %182 = vmatprep.subr.mxu0 0.0
    %v183 = vand.u32 %v133, 4294901760
    %184 = vmatpush1.msra.mxu0 %v183
    %185 = vmatprep.subr.mxu0 0.0
    %v186 = vand.u32 %v134, 4294901760
    %187 = vmatpush1.msra.mxu0 %v186
    %188 = vmatprep.subr.mxu0 0.0
    %v189 = vand.u32 %v135, 4294901760
    %190 = vmatpush1.msra.mxu0 %v189
    %191 = vmatprep.subr.mxu0 0.0
    %192 = vmatpush1.msra.mxu0 0.0
    %193 = vmatprep.subr.mxu0 0.0
    %194 = vmatpush1.msra.mxu0 0.0
    %195 = vmatprep.subr.mxu0 0.0
    %196 = vmatpush1.msra.mxu0 0.0
    %197 = vmatprep.subr.mxu0 0.0
    %198 = vmatpush1.msra.mxu0 0.0
    %199 = vmatprep.subr.mxu0 0.0
    %200 = vmatpush1.msra.mxu0 0.0
    %201 = vmatprep.subr.mxu0 0.0
    %202 = vmatpush1.msra.mxu0 0.0
    %203 = vmatprep.subr.mxu0 0.0
    %204 = vmatpush1.msra.mxu0 0.0
    %205 = vmatprep.subr.mxu0 0.0
    %206 = vmatpush1.msra.mxu0 0.0
    %207 = vmatprep.subr.mxu0 0.0
    %208 = vmatpush1.msra.mxu0 0.0
    %209 = vmatprep.subr.mxu0 0.0
    %210 = vmatpush1.msra.mxu0 0.0
    %211 = vmatprep.subr.mxu0 0.0
    %212 = vmatpush1.msra.mxu0 0.0
    %213 = vmatprep.subr.mxu0 0.0
    %214 = vmatpush1.msra.mxu0 0.0
    %215 = vmatprep.subr.mxu0 0.0
    %216 = vmatpush1.msra.mxu0 0.0
    %217 = vmatprep.subr.mxu0 0.0
    %218 = vmatpush1.msra.mxu0 0.0
    %219 = vmatprep.subr.mxu0 0.0
    %220 = vmatpush1.msra.mxu0 0.0
    %221 = vmatprep.subr.mxu0 0.0
    %222 = vmatpush1.msra.mxu0 0.0
    %223 = vmatprep.mubr.f32.mxu0 0.0
    %v224 = vand.u32 %v17, 4294901760
    %v225 = vsub.f32 %v17, %v224
    %v226 = vand.u32 %v225, 4294901760
    %v227 = vsub.f32 %v225, %v226
    %v228 = vand.u32 %v227, 4294901760
    %229 = vmatmul.mubr.f32.gmra.mrb[0].mxu0 %v228
    %v230 = vpop.f32.mrb[0].mxu0
    %v231 = vadd.f32 0.0, %v230
    %v232 = vpop.f32.mrb[0].mxu0
    %233 = vdwg.mxu0
    %234 = vmatprep.subr.mxu0 0.0
    %v235 = vand.u32 %v120, 4294901760
    %v236 = vsub.f32 %v120, %v235
    %v237 = vand.u32 %v236, 4294901760
    %v238 = vsub.f32 %v236, %v237
    %v239 = vand.u32 %v238, 4294901760
    %240 = vmatpush1.msra.mxu0 %v239
    %241 = vmatprep.subr.mxu0 0.0
    %v242 = vand.u32 %v121, 4294901760
    %v243 = vsub.f32 %v121, %v242
    %v244 = vand.u32 %v243, 4294901760
    %v245 = vsub.f32 %v243, %v244
    %v246 = vand.u32 %v245, 4294901760
    %247 = vmatpush1.msra.mxu0 %v246
    %248 = vmatprep.subr.mxu0 0.0
    %v249 = vand.u32 %v122, 4294901760
    %v250 = vsub.f32 %v122, %v249
    %v251 = vand.u32 %v250, 4294901760
    %v252 = vsub.f32 %v250, %v251
    %v253 = vand.u32 %v252, 4294901760
    %254 = vmatpush1.msra.mxu0 %v253
    %255 = vmatprep.subr.mxu0 0.0
    %v256 = vand.u32 %v123, 4294901760
    %v257 = vsub.f32 %v123, %v256
    %v258 = vand.u32 %v257, 4294901760
    %v259 = vsub.f32 %v257, %v258
    %v260 = vand.u32 %v259, 4294901760
    %261 = vmatpush1.msra.mxu0 %v260
    %262 = vmatprep.subr.mxu0 0.0
    %v263 = vand.u32 %v124, 4294901760
    %v264 = vsub.f32 %v124, %v263
    %v265 = vand.u32 %v264, 4294901760
    %v266 = vsub.f32 %v264, %v265
    %v267 = vand.u32 %v266, 4294901760
    %268 = vmatpush1.msra.mxu0 %v267
    %269 = vmatprep.subr.mxu0 0.0
    %v270 = vand.u32 %v125, 4294901760
    %v271 = vsub.f32 %v125, %v270
    %v272 = vand.u32 %v271, 4294901760
    %v273 = vsub.f32 %v271, %v272
    %v274 = vand.u32 %v273, 4294901760
    %275 = vmatpush1.msra.mxu0 %v274
    %276 = vmatprep.subr.mxu0 0.0
    %v277 = vand.u32 %v126, 4294901760
    %v278 = vsub.f32 %v126, %v277
    %v279 = vand.u32 %v278, 4294901760
    %v280 = vsub.f32 %v278, %v279
    %v281 = vand.u32 %v280, 4294901760
    %282 = vmatpush1.msra.mxu0 %v281
    %283 = vmatprep.subr.mxu0 0.0
    %v284 = vand.u32 %v127, 4294901760
    %v285 = vsub.f32 %v127, %v284
    %v286 = vand.u32 %v285, 4294901760
    %v287 = vsub.f32 %v285, %v286
    %v288 = vand.u32 %v287, 4294901760
    %289 = vmatpush1.msra.mxu0 %v288
    %290 = vmatprep.subr.mxu0 0.0
    %v291 = vand.u32 %v128, 4294901760
    %v292 = vsub.f32 %v128, %v291
    %v293 = vand.u32 %v292, 4294901760
    %v294 = vsub.f32 %v292, %v293
    %v295 = vand.u32 %v294, 4294901760
    %296 = vmatpush1.msra.mxu0 %v295
    %297 = vmatprep.subr.mxu0 0.0
    %v298 = vand.u32 %v129, 4294901760
    %v299 = vsub.f32 %v129, %v298
    %v300 = vand.u32 %v299, 4294901760
    %v301 = vsub.f32 %v299, %v300
    %v302 = vand.u32 %v301, 4294901760
    %303 = vmatpush1.msra.mxu0 %v302
    %304 = vmatprep.subr.mxu0 0.0
    %v305 = vand.u32 %v130, 4294901760
    %v306 = vsub.f32 %v130, %v305
    %v307 = vand.u32 %v306, 4294901760
    %v308 = vsub.f32 %v306, %v307
    %v309 = vand.u32 %v308, 4294901760
    %310 = vmatpush1.msra.mxu0 %v309
    %311 = vmatprep.subr.mxu0 0.0
    %v312 = vand.u32 %v131, 4294901760
    %v313 = vsub.f32 %v131, %v312
    %v314 = vand.u32 %v313, 4294901760
    %v315 = vsub.f32 %v313, %v314
    %v316 = vand.u32 %v315, 4294901760
    %317 = vmatpush1.msra.mxu0 %v316
    %318 = vmatprep.subr.mxu0 0.0
    %v319 = vand.u32 %v132, 4294901760
    %v320 = vsub.f32 %v132, %v319
    %v321 = vand.u32 %v320, 4294901760
    %v322 = vsub.f32 %v320, %v321
    %v323 = vand.u32 %v322, 4294901760
    %324 = vmatpush1.msra.mxu0 %v323
    %325 = vmatprep.subr.mxu0 0.0
    %v326 = vand.u32 %v133, 4294901760
    %v327 = vsub.f32 %v133, %v326
    %v328 = vand.u32 %v327, 4294901760
    %v329 = vsub.f32 %v327, %v328
    %v330 = vand.u32 %v329, 4294901760
    %331 = vmatpush1.msra.mxu0 %v330
    %332 = vmatprep.subr.mxu0 0.0
    %v333 = vand.u32 %v134, 4294901760
    %v334 = vsub.f32 %v134, %v333
    %v335 = vand.u32 %v334, 4294901760
    %v336 = vsub.f32 %v334, %v335
    %v337 = vand.u32 %v336, 4294901760
    %338 = vmatpush1.msra.mxu0 %v337
    %339 = vmatprep.subr.mxu0 0.0
    %v340 = vand.u32 %v135, 4294901760
    %v341 = vsub.f32 %v135, %v340
    %v342 = vand.u32 %v341, 4294901760
    %v343 = vsub.f32 %v341, %v342
    %v344 = vand.u32 %v343, 4294901760
    %345 = vmatpush1.msra.mxu0 %v344
    %346 = vmatprep.subr.mxu0 0.0
    %347 = vmatpush1.msra.mxu0 0.0
    %348 = vmatprep.subr.mxu0 0.0
    %349 = vmatpush1.msra.mxu0 0.0
    %350 = vmatprep.subr.mxu0 0.0
    %351 = vmatpush1.msra.mxu0 0.0
    %352 = vmatprep.subr.mxu0 0.0
    %353 = vmatpush1.msra.mxu0 0.0
    %354 = vmatprep.subr.mxu0 0.0
    %355 = vmatpush1.msra.mxu0 0.0
    %356 = vmatprep.subr.mxu0 0.0
    %357 = vmatpush1.msra.mxu0 0.0
    %358 = vmatprep.subr.mxu0 0.0
    %359 = vmatpush1.msra.mxu0 0.0
    %360 = vmatprep.subr.mxu0 0.0
    %361 = vmatpush1.msra.mxu0 0.0
    %362 = vmatprep.subr.mxu0 0.0
    %363 = vmatpush1.msra.mxu0 0.0
    %364 = vmatprep.subr.mxu0 0.0
    %365 = vmatpush1.msra.mxu0 0.0
    %366 = vmatprep.subr.mxu0 0.0
    %367 = vmatpush1.msra.mxu0 0.0
    %368 = vmatprep.subr.mxu0 0.0
    %369 = vmatpush1.msra.mxu0 0.0
    %370 = vmatprep.subr.mxu0 0.0
    %371 = vmatpush1.msra.mxu0 0.0
    %372 = vmatprep.subr.mxu0 0.0
    %373 = vmatpush1.msra.mxu0 0.0
    %374 = vmatprep.subr.mxu0 0.0
    %375 = vmatpush1.msra.mxu0 0.0
    %376 = vmatprep.subr.mxu0 0.0
    %377 = vmatpush1.msra.mxu0 0.0
    %378 = vmatprep.mubr.f32.mxu0 0.0
    %v379 = vand.u32 %v17, 4294901760
    %380 = vmatmul.mubr.f32.gmra.mrb[0].mxu0 %v379
    %v381 = vpop.f32.mrb[0].mxu0
    %v382 = vadd.f32 %v231, %v381
    %v383 = vpop.f32.mrb[0].mxu0
    %384 = vdwg.mxu0
    %385 = vmatprep.subr.mxu0 0.0
    %v386 = vand.u32 %v120, 4294901760
    %v387 = vsub.f32 %v120, %v386
    %388 = vmatpush1.msra.mxu0 %v387
    %389 = vmatprep.subr.mxu0 0.0
    %v390 = vand.u32 %v121, 4294901760
    %v391 = vsub.f32 %v121, %v390
    %392 = vmatpush1.msra.mxu0 %v391
    %393 = vmatprep.subr.mxu0 0.0
    %v394 = vand.u32 %v122, 4294901760
    %v395 = vsub.f32 %v122, %v394
    %396 = vmatpush1.msra.mxu0 %v395
    %397 = vmatprep.subr.mxu0 0.0
    %v398 = vand.u32 %v123, 4294901760
    %v399 = vsub.f32 %v123, %v398
    %400 = vmatpush1.msra.mxu0 %v399
    %401 = vmatprep.subr.mxu0 0.0
    %v402 = vand.u32 %v124, 4294901760
    %v403 = vsub.f32 %v124, %v402
    %404 = vmatpush1.msra.mxu0 %v403
    %405 = vmatprep.subr.mxu0 0.0
    %v406 = vand.u32 %v125, 4294901760
    %v407 = vsub.f32 %v125, %v406
    %408 = vmatpush1.msra.mxu0 %v407
    %409 = vmatprep.subr.mxu0 0.0
    %v410 = vand.u32 %v126, 4294901760
    %v411 = vsub.f32 %v126, %v410
    %412 = vmatpush1.msra.mxu0 %v411
    %413 = vmatprep.subr.mxu0 0.0
    %v414 = vand.u32 %v127, 4294901760
    %v415 = vsub.f32 %v127, %v414
    %416 = vmatpush1.msra.mxu0 %v415
    %417 = vmatprep.subr.mxu0 0.0
    %v418 = vand.u32 %v128, 4294901760
    %v419 = vsub.f32 %v128, %v418
    %420 = vmatpush1.msra.mxu0 %v419
    %421 = vmatprep.subr.mxu0 0.0
    %v422 = vand.u32 %v129, 4294901760
    %v423 = vsub.f32 %v129, %v422
    %424 = vmatpush1.msra.mxu0 %v423
    %425 = vmatprep.subr.mxu0 0.0
    %v426 = vand.u32 %v130, 4294901760
    %v427 = vsub.f32 %v130, %v426
    %428 = vmatpush1.msra.mxu0 %v427
    %429 = vmatprep.subr.mxu0 0.0
    %v430 = vand.u32 %v131, 4294901760
    %v431 = vsub.f32 %v131, %v430
    %432 = vmatpush1.msra.mxu0 %v431
    %433 = vmatprep.subr.mxu0 0.0
    %v434 = vand.u32 %v132, 4294901760
    %v435 = vsub.f32 %v132, %v434
    %436 = vmatpush1.msra.mxu0 %v435
    %437 = vmatprep.subr.mxu0 0.0
    %v438 = vand.u32 %v133, 4294901760
    %v439 = vsub.f32 %v133, %v438
    %440 = vmatpush1.msra.mxu0 %v439
    %441 = vmatprep.subr.mxu0 0.0
    %v442 = vand.u32 %v134, 4294901760
    %v443 = vsub.f32 %v134, %v442
    %444 = vmatpush1.msra.mxu0 %v443
    %445 = vmatprep.subr.mxu0 0.0
    %v446 = vand.u32 %v135, 4294901760
    %v447 = vsub.f32 %v135, %v446
    %448 = vmatpush1.msra.mxu0 %v447
    %449 = vmatprep.subr.mxu0 0.0
    %450 = vmatpush1.msra.mxu0 0.0
    %451 = vmatprep.subr.mxu0 0.0
    %452 = vmatpush1.msra.mxu0 0.0
    %453 = vmatprep.subr.mxu0 0.0
    %454 = vmatpush1.msra.mxu0 0.0
    %455 = vmatprep.subr.mxu0 0.0
    %456 = vmatpush1.msra.mxu0 0.0
    %457 = vmatprep.subr.mxu0 0.0
    %458 = vmatpush1.msra.mxu0 0.0
    %459 = vmatprep.subr.mxu0 0.0
    %460 = vmatpush1.msra.mxu0 0.0
    %461 = vmatprep.subr.mxu0 0.0
    %462 = vmatpush1.msra.mxu0 0.0
    %463 = vmatprep.subr.mxu0 0.0
    %464 = vmatpush1.msra.mxu0 0.0
    %465 = vmatprep.subr.mxu0 0.0
    %466 = vmatpush1.msra.mxu0 0.0
    %467 = vmatprep.subr.mxu0 0.0
    %468 = vmatpush1.msra.mxu0 0.0
    %469 = vmatprep.subr.mxu0 0.0
    %470 = vmatpush1.msra.mxu0 0.0
    %471 = vmatprep.subr.mxu0 0.0
    %472 = vmatpush1.msra.mxu0 0.0
    %473 = vmatprep.subr.mxu0 0.0
    %474 = vmatpush1.msra.mxu0 0.0
    %475 = vmatprep.subr.mxu0 0.0
    %476 = vmatpush1.msra.mxu0 0.0
    %477 = vmatprep.subr.mxu0 0.0
    %478 = vmatpush1.msra.mxu0 0.0
    %479 = vmatprep.subr.mxu0 0.0
    %480 = vmatpush1.msra.mxu0 0.0
    %481 = vmatprep.mubr.f32.mxu0 0.0
    %v482 = vand.u32 %v17, 4294901760
    %v483 = vsub.f32 %v17, %v482
    %484 = vmatmul.mubr.f32.gmra.mrb[0].mxu0 %v483
    %v485 = vpop.f32.mrb[0].mxu0
    %v486 = vadd.f32 %v382, %v485
    %v487 = vpop.f32.mrb[0].mxu0
    %488 = vdwg.mxu0
    %489 = vmatprep.subr.mxu0 0.0
    %v490 = vand.u32 %v120, 4294901760
    %491 = vmatpush1.msra.mxu0 %v490
    %492 = vmatprep.subr.mxu0 0.0
    %v493 = vand.u32 %v121, 4294901760
    %494 = vmatpush1.msra.mxu0 %v493
    %495 = vmatprep.subr.mxu0 0.0
    %v496 = vand.u32 %v122, 4294901760
    %497 = vmatpush1.msra.mxu0 %v496
    %498 = vmatprep.subr.mxu0 0.0
    %v499 = vand.u32 %v123, 4294901760
    %500 = vmatpush1.msra.mxu0 %v499
    %501 = vmatprep.subr.mxu0 0.0
    %v502 = vand.u32 %v124, 4294901760
    %503 = vmatpush1.msra.mxu0 %v502
    %504 = vmatprep.subr.mxu0 0.0
    %v505 = vand.u32 %v125, 4294901760
    %506 = vmatpush1.msra.mxu0 %v505
    %507 = vmatprep.subr.mxu0 0.0
    %v508 = vand.u32 %v126, 4294901760
    %509 = vmatpush1.msra.mxu0 %v508
    %510 = vmatprep.subr.mxu0 0.0
    %v511 = vand.u32 %v127, 4294901760
    %512 = vmatpush1.msra.mxu0 %v511
    %513 = vmatprep.subr.mxu0 0.0
    %v514 = vand.u32 %v128, 4294901760
    %515 = vmatpush1.msra.mxu0 %v514
    %516 = vmatprep.subr.mxu0 0.0
    %v517 = vand.u32 %v129, 4294901760
    %518 = vmatpush1.msra.mxu0 %v517
    %519 = vmatprep.subr.mxu0 0.0
    %v520 = vand.u32 %v130, 4294901760
    %521 = vmatpush1.msra.mxu0 %v520
    %522 = vmatprep.subr.mxu0 0.0
    %v523 = vand.u32 %v131, 4294901760
    %524 = vmatpush1.msra.mxu0 %v523
    %525 = vmatprep.subr.mxu0 0.0
    %v526 = vand.u32 %v132, 4294901760
    %527 = vmatpush1.msra.mxu0 %v526
    %528 = vmatprep.subr.mxu0 0.0
    %v529 = vand.u32 %v133, 4294901760
    %530 = vmatpush1.msra.mxu0 %v529
    %531 = vmatprep.subr.mxu0 0.0
    %v532 = vand.u32 %v134, 4294901760
    %533 = vmatpush1.msra.mxu0 %v532
    %534 = vmatprep.subr.mxu0 0.0
    %v535 = vand.u32 %v135, 4294901760
    %536 = vmatpush1.msra.mxu0 %v535
    %537 = vmatprep.subr.mxu0 0.0
    %538 = vmatpush1.msra.mxu0 0.0
    %539 = vmatprep.subr.mxu0 0.0
    %540 = vmatpush1.msra.mxu0 0.0
    %541 = vmatprep.subr.mxu0 0.0
    %542 = vmatpush1.msra.mxu0 0.0
    %543 = vmatprep.subr.mxu0 0.0
    %544 = vmatpush1.msra.mxu0 0.0
    %545 = vmatprep.subr.mxu0 0.0
    %546 = vmatpush1.msra.mxu0 0.0
    %547 = vmatprep.subr.mxu0 0.0
    %548 = vmatpush1.msra.mxu0 0.0
    %549 = vmatprep.subr.mxu0 0.0
    %550 = vmatpush1.msra.mxu0 0.0
    %551 = vmatprep.subr.mxu0 0.0
    %552 = vmatpush1.msra.mxu0 0.0
    %553 = vmatprep.subr.mxu0 0.0
    %554 = vmatpush1.msra.mxu0 0.0
    %555 = vmatprep.subr.mxu0 0.0
    %556 = vmatpush1.msra.mxu0 0.0
    %557 = vmatprep.subr.mxu0 0.0
    %558 = vmatpush1.msra.mxu0 0.0
    %559 = vmatprep.subr.mxu0 0.0
    %560 = vmatpush1.msra.mxu0 0.0
    %561 = vmatprep.subr.mxu0 0.0
    %562 = vmatpush1.msra.mxu0 0.0
    %563 = vmatprep.subr.mxu0 0.0
    %564 = vmatpush1.msra.mxu0 0.0
    %565 = vmatprep.subr.mxu0 0.0
    %566 = vmatpush1.msra.mxu0 0.0
    %567 = vmatprep.subr.mxu0 0.0
    %568 = vmatpush1.msra.mxu0 0.0
    %569 = vmatprep.mubr.f32.mxu0 0.0
    %v570 = vand.u32 %v17, 4294901760
    %v571 = vsub.f32 %v17, %v570
    %v572 = vand.u32 %v571, 4294901760
    %573 = vmatmul.mubr.f32.gmra.mrb[0].mxu0 %v572
    %v574 = vpop.f32.mrb[0].mxu0
    %v575 = vadd.f32 %v486, %v574
    %v576 = vpop.f32.mrb[0].mxu0
    %577 = vdwg.mxu0
    %578 = vmatprep.subr.mxu0 0.0
    %v579 = vand.u32 %v120, 4294901760
    %v580 = vsub.f32 %v120, %v579
    %v581 = vand.u32 %v580, 4294901760
    %582 = vmatpush1.msra.mxu0 %v581
    %583 = vmatprep.subr.mxu0 0.0
    %v584 = vand.u32 %v121, 4294901760
    %v585 = vsub.f32 %v121, %v584
    %v586 = vand.u32 %v585, 4294901760
    %587 = vmatpush1.msra.mxu0 %v586
    %588 = vmatprep.subr.mxu0 0.0
    %v589 = vand.u32 %v122, 4294901760
    %v590 = vsub.f32 %v122, %v589
    %v591 = vand.u32 %v590, 4294901760
    %592 = vmatpush1.msra.mxu0 %v591
    %593 = vmatprep.subr.mxu0 0.0
    %v594 = vand.u32 %v123, 4294901760
    %v595 = vsub.f32 %v123, %v594
    %v596 = vand.u32 %v595, 4294901760
    %597 = vmatpush1.msra.mxu0 %v596
    %598 = vmatprep.subr.mxu0 0.0
    %v599 = vand.u32 %v124, 4294901760
    %v600 = vsub.f32 %v124, %v599
    %v601 = vand.u32 %v600, 4294901760
    %602 = vmatpush1.msra.mxu0 %v601
    %603 = vmatprep.subr.mxu0 0.0
    %v604 = vand.u32 %v125, 4294901760
    %v605 = vsub.f32 %v125, %v604
    %v606 = vand.u32 %v605, 4294901760
    %607 = vmatpush1.msra.mxu0 %v606
    %608 = vmatprep.subr.mxu0 0.0
    %v609 = vand.u32 %v126, 4294901760
    %v610 = vsub.f32 %v126, %v609
    %v611 = vand.u32 %v610, 4294901760
    %612 = vmatpush1.msra.mxu0 %v611
    %613 = vmatprep.subr.mxu0 0.0
    %v614 = vand.u32 %v127, 4294901760
    %v615 = vsub.f32 %v127, %v614
    %v616 = vand.u32 %v615, 4294901760
    %617 = vmatpush1.msra.mxu0 %v616
    %618 = vmatprep.subr.mxu0 0.0
    %v619 = vand.u32 %v128, 4294901760
    %v620 = vsub.f32 %v128, %v619
    %v621 = vand.u32 %v620, 4294901760
    %622 = vmatpush1.msra.mxu0 %v621
    %623 = vmatprep.subr.mxu0 0.0
    %v624 = vand.u32 %v129, 4294901760
    %v625 = vsub.f32 %v129, %v624
    %v626 = vand.u32 %v625, 4294901760
    %627 = vmatpush1.msra.mxu0 %v626
    %628 = vmatprep.subr.mxu0 0.0
    %v629 = vand.u32 %v130, 4294901760
    %v630 = vsub.f32 %v130, %v629
    %v631 = vand.u32 %v630, 4294901760
    %632 = vmatpush1.msra.mxu0 %v631
    %633 = vmatprep.subr.mxu0 0.0
    %v634 = vand.u32 %v131, 4294901760
    %v635 = vsub.f32 %v131, %v634
    %v636 = vand.u32 %v635, 4294901760
    %637 = vmatpush1.msra.mxu0 %v636
    %638 = vmatprep.subr.mxu0 0.0
    %v639 = vand.u32 %v132, 4294901760
    %v640 = vsub.f32 %v132, %v639
    %v641 = vand.u32 %v640, 4294901760
    %642 = vmatpush1.msra.mxu0 %v641
    %643 = vmatprep.subr.mxu0 0.0
    %v644 = vand.u32 %v133, 4294901760
    %v645 = vsub.f32 %v133, %v644
    %v646 = vand.u32 %v645, 4294901760
    %647 = vmatpush1.msra.mxu0 %v646
    %648 = vmatprep.subr.mxu0 0.0
    %v649 = vand.u32 %v134, 4294901760
    %v650 = vsub.f32 %v134, %v649
    %v651 = vand.u32 %v650, 4294901760
    %652 = vmatpush1.msra.mxu0 %v651
    %653 = vmatprep.subr.mxu0 0.0
    %v654 = vand.u32 %v135, 4294901760
    %v655 = vsub.f32 %v135, %v654
    %v656 = vand.u32 %v655, 4294901760
    %657 = vmatpush1.msra.mxu0 %v656
    %658 = vmatprep.subr.mxu0 0.0
    %659 = vmatpush1.msra.mxu0 0.0
    %660 = vmatprep.subr.mxu0 0.0
    %661 = vmatpush1.msra.mxu0 0.0
    %662 = vmatprep.subr.mxu0 0.0
    %663 = vmatpush1.msra.mxu0 0.0
    %664 = vmatprep.subr.mxu0 0.0
    %665 = vmatpush1.msra.mxu0 0.0
    %666 = vmatprep.subr.mxu0 0.0
    %667 = vmatpush1.msra.mxu0 0.0
    %668 = vmatprep.subr.mxu0 0.0
    %669 = vmatpush1.msra.mxu0 0.0
    %670 = vmatprep.subr.mxu0 0.0
    %671 = vmatpush1.msra.mxu0 0.0
    %672 = vmatprep.subr.mxu0 0.0
    %673 = vmatpush1.msra.mxu0 0.0
    %674 = vmatprep.subr.mxu0 0.0
    %675 = vmatpush1.msra.mxu0 0.0
    %676 = vmatprep.subr.mxu0 0.0
    %677 = vmatpush1.msra.mxu0 0.0
    %678 = vmatprep.subr.mxu0 0.0
    %679 = vmatpush1.msra.mxu0 0.0
    %680 = vmatprep.subr.mxu0 0.0
    %681 = vmatpush1.msra.mxu0 0.0
    %682 = vmatprep.subr.mxu0 0.0
    %683 = vmatpush1.msra.mxu0 0.0
    %684 = vmatprep.subr.mxu0 0.0
    %685 = vmatpush1.msra.mxu0 0.0
    %686 = vmatprep.subr.mxu0 0.0
    %687 = vmatpush1.msra.mxu0 0.0
    %688 = vmatprep.subr.mxu0 0.0
    %689 = vmatpush1.msra.mxu0 0.0
    %690 = vmatprep.mubr.f32.mxu0 0.0
    %v691 = vand.u32 %v17, 4294901760
    %692 = vmatmul.mubr.f32.gmra.mrb[0].mxu0 %v691
    %v693 = vpop.f32.mrb[0].mxu0
    %v694 = vadd.f32 %v575, %v693
    %v695 = vpop.f32.mrb[0].mxu0
    %696 = vdwg.mxu0
    %697 = vmatprep.subr.mxu0 0.0
    %v698 = vand.u32 %v120, 4294901760
    %699 = vmatpush1.msra.mxu0 %v698
    %700 = vmatprep.subr.mxu0 0.0
    %v701 = vand.u32 %v121, 4294901760
    %702 = vmatpush1.msra.mxu0 %v701
    %703 = vmatprep.subr.mxu0 0.0
    %v704 = vand.u32 %v122, 4294901760
    %705 = vmatpush1.msra.mxu0 %v704
    %706 = vmatprep.subr.mxu0 0.0
    %v707 = vand.u32 %v123, 4294901760
    %708 = vmatpush1.msra.mxu0 %v707
    %709 = vmatprep.subr.mxu0 0.0
    %v710 = vand.u32 %v124, 4294901760
    %711 = vmatpush1.msra.mxu0 %v710
    %712 = vmatprep.subr.mxu0 0.0
    %v713 = vand.u32 %v125, 4294901760
    %714 = vmatpush1.msra.mxu0 %v713
    %715 = vmatprep.subr.mxu0 0.0
    %v716 = vand.u32 %v126, 4294901760
    %717 = vmatpush1.msra.mxu0 %v716
    %718 = vmatprep.subr.mxu0 0.0
    %v719 = vand.u32 %v127, 4294901760
    %720 = vmatpush1.msra.mxu0 %v719
    %721 = vmatprep.subr.mxu0 0.0
    %v722 = vand.u32 %v128, 4294901760
    %723 = vmatpush1.msra.mxu0 %v722
    %724 = vmatprep.subr.mxu0 0.0
    %v725 = vand.u32 %v129, 4294901760
    %726 = vmatpush1.msra.mxu0 %v725
    %727 = vmatprep.subr.mxu0 0.0
    %v728 = vand.u32 %v130, 4294901760
    %729 = vmatpush1.msra.mxu0 %v728
    %730 = vmatprep.subr.mxu0 0.0
    %v731 = vand.u32 %v131, 4294901760
    %732 = vmatpush1.msra.mxu0 %v731
    %733 = vmatprep.subr.mxu0 0.0
    %v734 = vand.u32 %v132, 4294901760
    %735 = vmatpush1.msra.mxu0 %v734
    %736 = vmatprep.subr.mxu0 0.0
    %v737 = vand.u32 %v133, 4294901760
    %738 = vmatpush1.msra.mxu0 %v737
    %739 = vmatprep.subr.mxu0 0.0
    %v740 = vand.u32 %v134, 4294901760
    %741 = vmatpush1.msra.mxu0 %v740
    %742 = vmatprep.subr.mxu0 0.0
    %v743 = vand.u32 %v135, 4294901760
    %744 = vmatpush1.msra.mxu0 %v743
    %745 = vmatprep.subr.mxu0 0.0
    %746 = vmatpush1.msra.mxu0 0.0
    %747 = vmatprep.subr.mxu0 0.0
    %748 = vmatpush1.msra.mxu0 0.0
    %749 = vmatprep.subr.mxu0 0.0
    %750 = vmatpush1.msra.mxu0 0.0
    %751 = vmatprep.subr.mxu0 0.0
    %752 = vmatpush1.msra.mxu0 0.0
    %753 = vmatprep.subr.mxu0 0.0
    %754 = vmatpush1.msra.mxu0 0.0
    %755 = vmatprep.subr.mxu0 0.0
    %756 = vmatpush1.msra.mxu0 0.0
    %757 = vmatprep.subr.mxu0 0.0
    %758 = vmatpush1.msra.mxu0 0.0
    %759 = vmatprep.subr.mxu0 0.0
    %760 = vmatpush1.msra.mxu0 0.0
    %761 = vmatprep.subr.mxu0 0.0
    %762 = vmatpush1.msra.mxu0 0.0
    %763 = vmatprep.subr.mxu0 0.0
    %764 = vmatpush1.msra.mxu0 0.0
    %765 = vmatprep.subr.mxu0 0.0
    %766 = vmatpush1.msra.mxu0 0.0
    %767 = vmatprep.subr.mxu0 0.0
    %768 = vmatpush1.msra.mxu0 0.0
    %769 = vmatprep.subr.mxu0 0.0
    %770 = vmatpush1.msra.mxu0 0.0
    %771 = vmatprep.subr.mxu0 0.0
    %772 = vmatpush1.msra.mxu0 0.0
    %773 = vmatprep.subr.mxu0 0.0
    %774 = vmatpush1.msra.mxu0 0.0
    %775 = vmatprep.subr.mxu0 0.0
    %776 = vmatpush1.msra.mxu0 0.0
    %777 = vmatprep.mubr.f32.mxu0 0.0
    %v778 = vand.u32 %v17, 4294901760
    %779 = vmatmul.mubr.f32.gmra.mrb[0].mxu0 %v778
    %v780 = vpop.f32.mrb[0].mxu0
    %v781 = vadd.f32 %v694, %v780
    %v782 = vpop.f32.mrb[0].mxu0
    %783 = vdwg.mxu0
    %v784 = vmul.f32 %v781, 0.03125
    %vm785 = vcmask 31744
    %v787 = vsel %vm785, %v784, 0
    %vm789 = vcmask 1043456
    %v791 = vsel %vm789, %v142, 0
    %793 = vmatprep.subr.mxu0 0.0
    %v794 = vand.u32 %v791, 4294901760
    %795 = vmatpush1.msra.mxu0 %v794
    %796 = vmatprep.subr.mxu0 0.0
    %797 = vmatpush1.msra.mxu0 0.0
    %798 = vmatprep.subr.mxu0 0.0
    %799 = vmatpush1.msra.mxu0 0.0
    %800 = vmatprep.subr.mxu0 0.0
    %801 = vmatpush1.msra.mxu0 0.0
    %802 = vmatprep.subr.mxu0 0.0
    %803 = vmatpush1.msra.mxu0 0.0
    %804 = vmatprep.subr.mxu0 0.0
    %805 = vmatpush1.msra.mxu0 0.0
    %806 = vmatprep.subr.mxu0 0.0
    %807 = vmatpush1.msra.mxu0 0.0
    %808 = vmatprep.subr.mxu0 0.0
    %809 = vmatpush1.msra.mxu0 0.0
    %810 = vmatprep.subr.mxu0 0.0
    %811 = vmatpush1.msra.mxu0 0.0
    %812 = vmatprep.subr.mxu0 0.0
    %813 = vmatpush1.msra.mxu0 0.0
    %814 = vmatprep.subr.mxu0 0.0
    %815 = vmatpush1.msra.mxu0 0.0
    %816 = vmatprep.subr.mxu0 0.0
    %817 = vmatpush1.msra.mxu0 0.0
    %818 = vmatprep.subr.mxu0 0.0
    %819 = vmatpush1.msra.mxu0 0.0
    %820 = vmatprep.subr.mxu0 0.0
    %821 = vmatpush1.msra.mxu0 0.0
    %822 = vmatprep.subr.mxu0 0.0
    %823 = vmatpush1.msra.mxu0 0.0
    %824 = vmatprep.subr.mxu0 0.0
    %825 = vmatpush1.msra.mxu0 0.0
    %826 = vmatprep.subr.mxu0 0.0
    %827 = vmatpush1.msra.mxu0 0.0
    %828 = vmatprep.subr.mxu0 0.0
    %829 = vmatpush1.msra.mxu0 0.0
    %830 = vmatprep.subr.mxu0 0.0
    %831 = vmatpush1.msra.mxu0 0.0
    %832 = vmatprep.subr.mxu0 0.0
    %833 = vmatpush1.msra.mxu0 0.0
    %834 = vmatprep.subr.mxu0 0.0
    %835 = vmatpush1.msra.mxu0 0.0
    %836 = vmatprep.subr.mxu0 0.0
    %837 = vmatpush1.msra.mxu0 0.0
    %838 = vmatprep.subr.mxu0 0.0
    %839 = vmatpush1.msra.mxu0 0.0
    %840 = vmatprep.subr.mxu0 0.0
    %841 = vmatpush1.msra.mxu0 0.0
    %842 = vmatprep.subr.mxu0 0.0
    %843 = vmatpush1.msra.mxu0 0.0
    %844 = vmatprep.subr.mxu0 0.0
    %845 = vmatpush1.msra.mxu0 0.0
    %846 = vmatprep.subr.mxu0 0.0
    %847 = vmatpush1.msra.mxu0 0.0
    %848 = vmatprep.subr.mxu0 0.0
    %849 = vmatpush1.msra.mxu0 0.0
    %850 = vmatprep.subr.mxu0 0.0
    %851 = vmatpush1.msra.mxu0 0.0
    %852 = vmatprep.subr.mxu0 0.0
    %853 = vmatpush1.msra.mxu0 0.0
    %854 = vmatprep.subr.mxu0 0.0
    %855 = vmatpush1.msra.mxu0 0.0
    %856 = vmatprep.subr.mxu0 0.0
    %857 = vmatpush1.msra.mxu0 0.0
    %858 = vmatprep.mubr.f32.mxu0 0.0
    %v859 = vand.u32 %v787, 4294901760
    %v860 = vsub.f32 %v787, %v859
    %v861 = vand.u32 %v860, 4294901760
    %v862 = vsub.f32 %v860, %v861
    %v863 = vand.u32 %v862, 4294901760
    %864 = vmatmul.mubr.f32.gmra.mrb[0].mxu0 %v863
    %v865 = vpop.f32.mrb[0].mxu0
    %v866 = vadd.f32 0.0, %v865
    %v867 = vpop.f32.mrb[0].mxu0
    %868 = vdwg.mxu0
    %869 = vmatprep.subr.mxu0 0.0
    %v870 = vand.u32 %v791, 4294901760
    %v871 = vsub.f32 %v791, %v870
    %v872 = vand.u32 %v871, 4294901760
    %v873 = vsub.f32 %v871, %v872
    %v874 = vand.u32 %v873, 4294901760
    %875 = vmatpush1.msra.mxu0 %v874
    %876 = vmatprep.subr.mxu0 0.0
    %877 = vmatpush1.msra.mxu0 0.0
    %878 = vmatprep.subr.mxu0 0.0
    %879 = vmatpush1.msra.mxu0 0.0
    %880 = vmatprep.subr.mxu0 0.0
    %881 = vmatpush1.msra.mxu0 0.0
    %882 = vmatprep.subr.mxu0 0.0
    %883 = vmatpush1.msra.mxu0 0.0
    %884 = vmatprep.subr.mxu0 0.0
    %885 = vmatpush1.msra.mxu0 0.0
    %886 = vmatprep.subr.mxu0 0.0
    %887 = vmatpush1.msra.mxu0 0.0
    %888 = vmatprep.subr.mxu0 0.0
    %889 = vmatpush1.msra.mxu0 0.0
    %890 = vmatprep.subr.mxu0 0.0
    %891 = vmatpush1.msra.mxu0 0.0
    %892 = vmatprep.subr.mxu0 0.0
    %893 = vmatpush1.msra.mxu0 0.0
    %894 = vmatprep.subr.mxu0 0.0
    %895 = vmatpush1.msra.mxu0 0.0
    %896 = vmatprep.subr.mxu0 0.0
    %897 = vmatpush1.msra.mxu0 0.0
    %898 = vmatprep.subr.mxu0 0.0
    %899 = vmatpush1.msra.mxu0 0.0
    %900 = vmatprep.subr.mxu0 0.0
    %901 = vmatpush1.msra.mxu0 0.0
    %902 = vmatprep.subr.mxu0 0.0
    %903 = vmatpush1.msra.mxu0 0.0
    %904 = vmatprep.subr.mxu0 0.0
    %905 = vmatpush1.msra.mxu0 0.0
    %906 = vmatprep.subr.mxu0 0.0
    %907 = vmatpush1.msra.mxu0 0.0
    %908 = vmatprep.subr.mxu0 0.0
    %909 = vmatpush1.msra.mxu0 0.0
    %910 = vmatprep.subr.mxu0 0.0
    %911 = vmatpush1.msra.mxu0 0.0
    %912 = vmatprep.subr.mxu0 0.0
    %913 = vmatpush1.msra.mxu0 0.0
    %914 = vmatprep.subr.mxu0 0.0
    %915 = vmatpush1.msra.mxu0 0.0
    %916 = vmatprep.subr.mxu0 0.0
    %917 = vmatpush1.msra.mxu0 0.0
    %918 = vmatprep.subr.mxu0 0.0
    %919 = vmatpush1.msra.mxu0 0.0
    %920 = vmatprep.subr.mxu0 0.0
    %921 = vmatpush1.msra.mxu0 0.0
    %922 = vmatprep.subr.mxu0 0.0
    %923 = vmatpush1.msra.mxu0 0.0
    %924 = vmatprep.subr.mxu0 0.0
    %925 = vmatpush1.msra.mxu0 0.0
    %926 = vmatprep.subr.mxu0 0.0
    %927 = vmatpush1.msra.mxu0 0.0
    %928 = vmatprep.subr.mxu0 0.0
    %929 = vmatpush1.msra.mxu0 0.0
    %930 = vmatprep.subr.mxu0 0.0
    %931 = vmatpush1.msra.mxu0 0.0
    %932 = vmatprep.subr.mxu0 0.0
    %933 = vmatpush1.msra.mxu0 0.0
    %934 = vmatprep.subr.mxu0 0.0
    %935 = vmatpush1.msra.mxu0 0.0
    %936 = vmatprep.subr.mxu0 0.0
    %937 = vmatpush1.msra.mxu0 0.0
    %938 = vmatprep.mubr.f32.mxu0 0.0
    %v939 = vand.u32 %v787, 4294901760
    %940 = vmatmul.mubr.f32.gmra.mrb[0].mxu0 %v939
    %v941 = vpop.f32.mrb[0].mxu0
    %v942 = vadd.f32 %v866, %v941
    %v943 = vpop.f32.mrb[0].mxu0
    %944 = vdwg.mxu0
    %945 = vmatprep.subr.mxu0 0.0
    %v946 = vand.u32 %v791, 4294901760
    %v947 = vsub.f32 %v791, %v946
    %948 = vmatpush1.msra.mxu0 %v947
    %949 = vmatprep.subr.mxu0 0.0
    %950 = vmatpush1.msra.mxu0 0.0
    %951 = vmatprep.subr.mxu0 0.0
    %952 = vmatpush1.msra.mxu0 0.0
    %953 = vmatprep.subr.mxu0 0.0
    %954 = vmatpush1.msra.mxu0 0.0
    %955 = vmatprep.subr.mxu0 0.0
    %956 = vmatpush1.msra.mxu0 0.0
    %957 = vmatprep.subr.mxu0 0.0
    %958 = vmatpush1.msra.mxu0 0.0
    %959 = vmatprep.subr.mxu0 0.0
    %960 = vmatpush1.msra.mxu0 0.0
    %961 = vmatprep.subr.mxu0 0.0
    %962 = vmatpush1.msra.mxu0 0.0
    %963 = vmatprep.subr.mxu0 0.0
    %964 = vmatpush1.msra.mxu0 0.0
    %965 = vmatprep.subr.mxu0 0.0
    %966 = vmatpush1.msra.mxu0 0.0
    %967 = vmatprep.subr.mxu0 0.0
    %968 = vmatpush1.msra.mxu0 0.0
    %969 = vmatprep.subr.mxu0 0.0
    %970 = vmatpush1.msra.mxu0 0.0
    %971 = vmatprep.subr.mxu0 0.0
    %972 = vmatpush1.msra.mxu0 0.0
    %973 = vmatprep.subr.mxu0 0.0
    %974 = vmatpush1.msra.mxu0 0.0
    %975 = vmatprep.subr.mxu0 0.0
    %976 = vmatpush1.msra.mxu0 0.0
    %977 = vmatprep.subr.mxu0 0.0
    %978 = vmatpush1.msra.mxu0 0.0
    %979 = vmatprep.subr.mxu0 0.0
    %980 = vmatpush1.msra.mxu0 0.0
    %981 = vmatprep.subr.mxu0 0.0
    %982 = vmatpush1.msra.mxu0 0.0
    %983 = vmatprep.subr.mxu0 0.0
    %984 = vmatpush1.msra.mxu0 0.0
    %985 = vmatprep.subr.mxu0 0.0
    %986 = vmatpush1.msra.mxu0 0.0
    %987 = vmatprep.subr.mxu0 0.0
    %988 = vmatpush1.msra.mxu0 0.0
    %989 = vmatprep.subr.mxu0 0.0
    %990 = vmatpush1.msra.mxu0 0.0
    %991 = vmatprep.subr.mxu0 0.0
    %992 = vmatpush1.msra.mxu0 0.0
    %993 = vmatprep.subr.mxu0 0.0
    %994 = vmatpush1.msra.mxu0 0.0
    %995 = vmatprep.subr.mxu0 0.0
    %996 = vmatpush1.msra.mxu0 0.0
    %997 = vmatprep.subr.mxu0 0.0
    %998 = vmatpush1.msra.mxu0 0.0
    %999 = vmatprep.subr.mxu0 0.0
    %1000 = vmatpush1.msra.mxu0 0.0
    %1001 = vmatprep.subr.mxu0 0.0
    %1002 = vmatpush1.msra.mxu0 0.0
    %1003 = vmatprep.subr.mxu0 0.0
    %1004 = vmatpush1.msra.mxu0 0.0
    %1005 = vmatprep.subr.mxu0 0.0
    %1006 = vmatpush1.msra.mxu0 0.0
    %1007 = vmatprep.subr.mxu0 0.0
    %1008 = vmatpush1.msra.mxu0 0.0
    %1009 = vmatprep.subr.mxu0 0.0
    %1010 = vmatpush1.msra.mxu0 0.0
    %1011 = vmatprep.mubr.f32.mxu0 0.0
    %v1012 = vand.u32 %v787, 4294901760
    %v1013 = vsub.f32 %v787, %v1012
    %1014 = vmatmul.mubr.f32.gmra.mrb[0].mxu0 %v1013
    %v1015 = vpop.f32.mrb[0].mxu0
    %v1016 = vadd.f32 %v942, %v1015
    %v1017 = vpop.f32.mrb[0].mxu0
    %1018 = vdwg.mxu0
    %1019 = vmatprep.subr.mxu0 0.0
    %v1020 = vand.u32 %v791, 4294901760
    %1021 = vmatpush1.msra.mxu0 %v1020
    %1022 = vmatprep.subr.mxu0 0.0
    %1023 = vmatpush1.msra.mxu0 0.0
    %1024 = vmatprep.subr.mxu0 0.0
    %1025 = vmatpush1.msra.mxu0 0.0
    %1026 = vmatprep.subr.mxu0 0.0
    %1027 = vmatpush1.msra.mxu0 0.0
    %1028 = vmatprep.subr.mxu0 0.0
    %1029 = vmatpush1.msra.mxu0 0.0
    %1030 = vmatprep.subr.mxu0 0.0
    %1031 = vmatpush1.msra.mxu0 0.0
    %1032 = vmatprep.subr.mxu0 0.0
    %1033 = vmatpush1.msra.mxu0 0.0
    %1034 = vmatprep.subr.mxu0 0.0
    %1035 = vmatpush1.msra.mxu0 0.0
    %1036 = vmatprep.subr.mxu0 0.0
    %1037 = vmatpush1.msra.mxu0 0.0
    %1038 = vmatprep.subr.mxu0 0.0
    %1039 = vmatpush1.msra.mxu0 0.0
    %1040 = vmatprep.subr.mxu0 0.0
    %1041 = vmatpush1.msra.mxu0 0.0
    %1042 = vmatprep.subr.mxu0 0.0
    %1043 = vmatpush1.msra.mxu0 0.0
    %1044 = vmatprep.subr.mxu0 0.0
    %1045 = vmatpush1.msra.mxu0 0.0
    %1046 = vmatprep.subr.mxu0 0.0
    %1047 = vmatpush1.msra.mxu0 0.0
    %1048 = vmatprep.subr.mxu0 0.0
    %1049 = vmatpush1.msra.mxu0 0.0
    %1050 = vmatprep.subr.mxu0 0.0
    %1051 = vmatpush1.msra.mxu0 0.0
    %1052 = vmatprep.subr.mxu0 0.0
    %1053 = vmatpush1.msra.mxu0 0.0
    %1054 = vmatprep.subr.mxu0 0.0
    %1055 = vmatpush1.msra.mxu0 0.0
    %1056 = vmatprep.subr.mxu0 0.0
    %1057 = vmatpush1.msra.mxu0 0.0
    %1058 = vmatprep.subr.mxu0 0.0
    %1059 = vmatpush1.msra.mxu0 0.0
    %1060 = vmatprep.subr.mxu0 0.0
    %1061 = vmatpush1.msra.mxu0 0.0
    %1062 = vmatprep.subr.mxu0 0.0
    %1063 = vmatpush1.msra.mxu0 0.0
    %1064 = vmatprep.subr.mxu0 0.0
    %1065 = vmatpush1.msra.mxu0 0.0
    %1066 = vmatprep.subr.mxu0 0.0
    %1067 = vmatpush1.msra.mxu0 0.0
    %1068 = vmatprep.subr.mxu0 0.0
    %1069 = vmatpush1.msra.mxu0 0.0
    %1070 = vmatprep.subr.mxu0 0.0
    %1071 = vmatpush1.msra.mxu0 0.0
    %1072 = vmatprep.subr.mxu0 0.0
    %1073 = vmatpush1.msra.mxu0 0.0
    %1074 = vmatprep.subr.mxu0 0.0
    %1075 = vmatpush1.msra.mxu0 0.0
    %1076 = vmatprep.subr.mxu0 0.0
    %1077 = vmatpush1.msra.mxu0 0.0
    %1078 = vmatprep.subr.mxu0 0.0
    %1079 = vmatpush1.msra.mxu0 0.0
    %1080 = vmatprep.subr.mxu0 0.0
    %1081 = vmatpush1.msra.mxu0 0.0
    %1082 = vmatprep.subr.mxu0 0.0
    %1083 = vmatpush1.msra.mxu0 0.0
    %1084 = vmatprep.mubr.f32.mxu0 0.0
    %v1085 = vand.u32 %v787, 4294901760
    %v1086 = vsub.f32 %v787, %v1085
    %v1087 = vand.u32 %v1086, 4294901760
    %1088 = vmatmul.mubr.f32.gmra.mrb[0].mxu0 %v1087
    %v1089 = vpop.f32.mrb[0].mxu0
    %v1090 = vadd.f32 %v1016, %v1089
    %v1091 = vpop.f32.mrb[0].mxu0
    %1092 = vdwg.mxu0
    %1093 = vmatprep.subr.mxu0 0.0
    %v1094 = vand.u32 %v791, 4294901760
    %v1095 = vsub.f32 %v791, %v1094
    %v1096 = vand.u32 %v1095, 4294901760
    %1097 = vmatpush1.msra.mxu0 %v1096
    %1098 = vmatprep.subr.mxu0 0.0
    %1099 = vmatpush1.msra.mxu0 0.0
    %1100 = vmatprep.subr.mxu0 0.0
    %1101 = vmatpush1.msra.mxu0 0.0
    %1102 = vmatprep.subr.mxu0 0.0
    %1103 = vmatpush1.msra.mxu0 0.0
    %1104 = vmatprep.subr.mxu0 0.0
    %1105 = vmatpush1.msra.mxu0 0.0
    %1106 = vmatprep.subr.mxu0 0.0
    %1107 = vmatpush1.msra.mxu0 0.0
    %1108 = vmatprep.subr.mxu0 0.0
    %1109 = vmatpush1.msra.mxu0 0.0
    %1110 = vmatprep.subr.mxu0 0.0
    %1111 = vmatpush1.msra.mxu0 0.0
    %1112 = vmatprep.subr.mxu0 0.0
    %1113 = vmatpush1.msra.mxu0 0.0
    %1114 = vmatprep.subr.mxu0 0.0
    %1115 = vmatpush1.msra.mxu0 0.0
    %1116 = vmatprep.subr.mxu0 0.0
    %1117 = vmatpush1.msra.mxu0 0.0
    %1118 = vmatprep.subr.mxu0 0.0
    %1119 = vmatpush1.msra.mxu0 0.0
    %1120 = vmatprep.subr.mxu0 0.0
    %1121 = vmatpush1.msra.mxu0 0.0
    %1122 = vmatprep.subr.mxu0 0.0
    %1123 = vmatpush1.msra.mxu0 0.0
    %1124 = vmatprep.subr.mxu0 0.0
    %1125 = vmatpush1.msra.mxu0 0.0
    %1126 = vmatprep.subr.mxu0 0.0
    %1127 = vmatpush1.msra.mxu0 0.0
    %1128 = vmatprep.subr.mxu0 0.0
    %1129 = vmatpush1.msra.mxu0 0.0
    %1130 = vmatprep.subr.mxu0 0.0
    %1131 = vmatpush1.msra.mxu0 0.0
    %1132 = vmatprep.subr.mxu0 0.0
    %1133 = vmatpush1.msra.mxu0 0.0
    %1134 = vmatprep.subr.mxu0 0.0
    %1135 = vmatpush1.msra.mxu0 0.0
    %1136 = vmatprep.subr.mxu0 0.0
    %1137 = vmatpush1.msra.mxu0 0.0
    %1138 = vmatprep.subr.mxu0 0.0
    %1139 = vmatpush1.msra.mxu0 0.0
    %1140 = vmatprep.subr.mxu0 0.0
    %1141 = vmatpush1.msra.mxu0 0.0
    %1142 = vmatprep.subr.mxu0 0.0
    %1143 = vmatpush1.msra.mxu0 0.0
    %1144 = vmatprep.subr.mxu0 0.0
    %1145 = vmatpush1.msra.mxu0 0.0
    %1146 = vmatprep.subr.mxu0 0.0
    %1147 = vmatpush1.msra.mxu0 0.0
    %1148 = vmatprep.subr.mxu0 0.0
    %1149 = vmatpush1.msra.mxu0 0.0
    %1150 = vmatprep.subr.mxu0 0.0
    %1151 = vmatpush1.msra.mxu0 0.0
    %1152 = vmatprep.subr.mxu0 0.0
    %1153 = vmatpush1.msra.mxu0 0.0
    %1154 = vmatprep.subr.mxu0 0.0
    %1155 = vmatpush1.msra.mxu0 0.0
    %1156 = vmatprep.subr.mxu0 0.0
    %1157 = vmatpush1.msra.mxu0 0.0
    %1158 = vmatprep.subr.mxu0 0.0
    %1159 = vmatpush1.msra.mxu0 0.0
    %1160 = vmatprep.mubr.f32.mxu0 0.0
    %v1161 = vand.u32 %v787, 4294901760
    %1162 = vmatmul.mubr.f32.gmra.mrb[0].mxu0 %v1161
    %v1163 = vpop.f32.mrb[0].mxu0
    %v1164 = vadd.f32 %v1090, %v1163
    %v1165 = vpop.f32.mrb[0].mxu0
    %1166 = vdwg.mxu0
    %1167 = vmatprep.subr.mxu0 0.0
    %v1168 = vand.u32 %v791, 4294901760
    %1169 = vmatpush1.msra.mxu0 %v1168
    %1170 = vmatprep.subr.mxu0 0.0
    %1171 = vmatpush1.msra.mxu0 0.0
    %1172 = vmatprep.subr.mxu0 0.0
    %1173 = vmatpush1.msra.mxu0 0.0
    %1174 = vmatprep.subr.mxu0 0.0
    %1175 = vmatpush1.msra.mxu0 0.0
    %1176 = vmatprep.subr.mxu0 0.0
    %1177 = vmatpush1.msra.mxu0 0.0
    %1178 = vmatprep.subr.mxu0 0.0
    %1179 = vmatpush1.msra.mxu0 0.0
    %1180 = vmatprep.subr.mxu0 0.0
    %1181 = vmatpush1.msra.mxu0 0.0
    %1182 = vmatprep.subr.mxu0 0.0
    %1183 = vmatpush1.msra.mxu0 0.0
    %1184 = vmatprep.subr.mxu0 0.0
    %1185 = vmatpush1.msra.mxu0 0.0
    %1186 = vmatprep.subr.mxu0 0.0
    %1187 = vmatpush1.msra.mxu0 0.0
    %1188 = vmatprep.subr.mxu0 0.0
    %1189 = vmatpush1.msra.mxu0 0.0
    %1190 = vmatprep.subr.mxu0 0.0
    %1191 = vmatpush1.msra.mxu0 0.0
    %1192 = vmatprep.subr.mxu0 0.0
    %1193 = vmatpush1.msra.mxu0 0.0
    %1194 = vmatprep.subr.mxu0 0.0
    %1195 = vmatpush1.msra.mxu0 0.0
    %1196 = vmatprep.subr.mxu0 0.0
    %1197 = vmatpush1.msra.mxu0 0.0
    %1198 = vmatprep.subr.mxu0 0.0
    %1199 = vmatpush1.msra.mxu0 0.0
    %1200 = vmatprep.subr.mxu0 0.0
    %1201 = vmatpush1.msra.mxu0 0.0
    %1202 = vmatprep.subr.mxu0 0.0
    %1203 = vmatpush1.msra.mxu0 0.0
    %1204 = vmatprep.subr.mxu0 0.0
    %1205 = vmatpush1.msra.mxu0 0.0
    %1206 = vmatprep.subr.mxu0 0.0
    %1207 = vmatpush1.msra.mxu0 0.0
    %1208 = vmatprep.subr.mxu0 0.0
    %1209 = vmatpush1.msra.mxu0 0.0
    %1210 = vmatprep.subr.mxu0 0.0
    %1211 = vmatpush1.msra.mxu0 0.0
    %1212 = vmatprep.subr.mxu0 0.0
    %1213 = vmatpush1.msra.mxu0 0.0
    %1214 = vmatprep.subr.mxu0 0.0
    %1215 = vmatpush1.msra.mxu0 0.0
    %1216 = vmatprep.subr.mxu0 0.0
    %1217 = vmatpush1.msra.mxu0 0.0
    %1218 = vmatprep.subr.mxu0 0.0
    %1219 = vmatpush1.msra.mxu0 0.0
    %1220 = vmatprep.subr.mxu0 0.0
    %1221 = vmatpush1.msra.mxu0 0.0
    %1222 = vmatprep.subr.mxu0 0.0
    %1223 = vmatpush1.msra.mxu0 0.0
    %1224 = vmatprep.subr.mxu0 0.0
    %1225 = vmatpush1.msra.mxu0 0.0
    %1226 = vmatprep.subr.mxu0 0.0
    %1227 = vmatpush1.msra.mxu0 0.0
    %1228 = vmatprep.subr.mxu0 0.0
    %1229 = vmatpush1.msra.mxu0 0.0
    %1230 = vmatprep.subr.mxu0 0.0
    %1231 = vmatpush1.msra.mxu0 0.0
    %1232 = vmatprep.mubr.f32.mxu0 0.0
    %v1233 = vand.u32 %v787, 4294901760
    %1234 = vmatmul.mubr.f32.gmra.mrb[0].mxu0 %v1233
    %v1235 = vpop.f32.mrb[0].mxu0
    %v1236 = vadd.f32 %v1164, %v1235
    %v1237 = vpop.f32.mrb[0].mxu0
    %1238 = vdwg.mxu0
    %v1239 = vsub.f32 %v17, %v1236
    %v1240 = vmul.f32 %v1239, %v1239
    %1241 = vmatprep.subr.mxu0 0.0
    %v1242 = vand.u32 %v120, 4294901760
    %1243 = vmatpush1.msra.mxu0 %v1242
    %1244 = vmatprep.subr.mxu0 0.0
    %v1245 = vand.u32 %v121, 4294901760
    %1246 = vmatpush1.msra.mxu0 %v1245
    %1247 = vmatprep.subr.mxu0 0.0
    %v1248 = vand.u32 %v122, 4294901760
    %1249 = vmatpush1.msra.mxu0 %v1248
    %1250 = vmatprep.subr.mxu0 0.0
    %v1251 = vand.u32 %v123, 4294901760
    %1252 = vmatpush1.msra.mxu0 %v1251
    %1253 = vmatprep.subr.mxu0 0.0
    %v1254 = vand.u32 %v124, 4294901760
    %1255 = vmatpush1.msra.mxu0 %v1254
    %1256 = vmatprep.subr.mxu0 0.0
    %v1257 = vand.u32 %v125, 4294901760
    %1258 = vmatpush1.msra.mxu0 %v1257
    %1259 = vmatprep.subr.mxu0 0.0
    %v1260 = vand.u32 %v126, 4294901760
    %1261 = vmatpush1.msra.mxu0 %v1260
    %1262 = vmatprep.subr.mxu0 0.0
    %v1263 = vand.u32 %v127, 4294901760
    %1264 = vmatpush1.msra.mxu0 %v1263
    %1265 = vmatprep.subr.mxu0 0.0
    %v1266 = vand.u32 %v128, 4294901760
    %1267 = vmatpush1.msra.mxu0 %v1266
    %1268 = vmatprep.subr.mxu0 0.0
    %v1269 = vand.u32 %v129, 4294901760
    %1270 = vmatpush1.msra.mxu0 %v1269
    %1271 = vmatprep.subr.mxu0 0.0
    %v1272 = vand.u32 %v130, 4294901760
    %1273 = vmatpush1.msra.mxu0 %v1272
    %1274 = vmatprep.subr.mxu0 0.0
    %v1275 = vand.u32 %v131, 4294901760
    %1276 = vmatpush1.msra.mxu0 %v1275
    %1277 = vmatprep.subr.mxu0 0.0
    %v1278 = vand.u32 %v132, 4294901760
    %1279 = vmatpush1.msra.mxu0 %v1278
    %1280 = vmatprep.subr.mxu0 0.0
    %v1281 = vand.u32 %v133, 4294901760
    %1282 = vmatpush1.msra.mxu0 %v1281
    %1283 = vmatprep.subr.mxu0 0.0
    %v1284 = vand.u32 %v134, 4294901760
    %1285 = vmatpush1.msra.mxu0 %v1284
    %1286 = vmatprep.subr.mxu0 0.0
    %v1287 = vand.u32 %v135, 4294901760
    %1288 = vmatpush1.msra.mxu0 %v1287
    %1289 = vmatprep.subr.mxu0 0.0
    %1290 = vmatpush1.msra.mxu0 0.0
    %1291 = vmatprep.subr.mxu0 0.0
    %1292 = vmatpush1.msra.mxu0 0.0
    %1293 = vmatprep.subr.mxu0 0.0
    %1294 = vmatpush1.msra.mxu0 0.0
    %1295 = vmatprep.subr.mxu0 0.0
    %1296 = vmatpush1.msra.mxu0 0.0
    %1297 = vmatprep.subr.mxu0 0.0
    %1298 = vmatpush1.msra.mxu0 0.0
    %1299 = vmatprep.subr.mxu0 0.0
    %1300 = vmatpush1.msra.mxu0 0.0
    %1301 = vmatprep.subr.mxu0 0.0
    %1302 = vmatpush1.msra.mxu0 0.0
    %1303 = vmatprep.subr.mxu0 0.0
    %1304 = vmatpush1.msra.mxu0 0.0
    %1305 = vmatprep.subr.mxu0 0.0
    %1306 = vmatpush1.msra.mxu0 0.0
    %1307 = vmatprep.subr.mxu0 0.0
    %1308 = vmatpush1.msra.mxu0 0.0
    %1309 = vmatprep.subr.mxu0 0.0
    %1310 = vmatpush1.msra.mxu0 0.0
    %1311 = vmatprep.subr.mxu0 0.0
    %1312 = vmatpush1.msra.mxu0 0.0
    %1313 = vmatprep.subr.mxu0 0.0
    %1314 = vmatpush1.msra.mxu0 0.0
    %1315 = vmatprep.subr.mxu0 0.0
    %1316 = vmatpush1.msra.mxu0 0.0
    %1317 = vmatprep.subr.mxu0 0.0
    %1318 = vmatpush1.msra.mxu0 0.0
    %1319 = vmatprep.subr.mxu0 0.0
    %1320 = vmatpush1.msra.mxu0 0.0
    %1321 = vmatprep.mubr.f32.mxu0 0.0
    %v1322 = vand.u32 %v1240, 4294901760
    %v1323 = vsub.f32 %v1240, %v1322
    %v1324 = vand.u32 %v1323, 4294901760
    %v1325 = vsub.f32 %v1323, %v1324
    %v1326 = vand.u32 %v1325, 4294901760
    %1327 = vmatmul.mubr.f32.gmra.mrb[0].mxu0 %v1326
    %v1328 = vpop.f32.mrb[0].mxu0
    %v1329 = vadd.f32 0.0, %v1328
    %v1330 = vpop.f32.mrb[0].mxu0
    %1331 = vdwg.mxu0
    %1332 = vmatprep.subr.mxu0 0.0
    %v1333 = vand.u32 %v120, 4294901760
    %v1334 = vsub.f32 %v120, %v1333
    %v1335 = vand.u32 %v1334, 4294901760
    %v1336 = vsub.f32 %v1334, %v1335
    %v1337 = vand.u32 %v1336, 4294901760
    %1338 = vmatpush1.msra.mxu0 %v1337
    %1339 = vmatprep.subr.mxu0 0.0
    %v1340 = vand.u32 %v121, 4294901760
    %v1341 = vsub.f32 %v121, %v1340
    %v1342 = vand.u32 %v1341, 4294901760
    %v1343 = vsub.f32 %v1341, %v1342
    %v1344 = vand.u32 %v1343, 4294901760
    %1345 = vmatpush1.msra.mxu0 %v1344
    %1346 = vmatprep.subr.mxu0 0.0
    %v1347 = vand.u32 %v122, 4294901760
    %v1348 = vsub.f32 %v122, %v1347
    %v1349 = vand.u32 %v1348, 4294901760
    %v1350 = vsub.f32 %v1348, %v1349
    %v1351 = vand.u32 %v1350, 4294901760
    %1352 = vmatpush1.msra.mxu0 %v1351
    %1353 = vmatprep.subr.mxu0 0.0
    %v1354 = vand.u32 %v123, 4294901760
    %v1355 = vsub.f32 %v123, %v1354
    %v1356 = vand.u32 %v1355, 4294901760
    %v1357 = vsub.f32 %v1355, %v1356
    %v1358 = vand.u32 %v1357, 4294901760
    %1359 = vmatpush1.msra.mxu0 %v1358
    %1360 = vmatprep.subr.mxu0 0.0
    %v1361 = vand.u32 %v124, 4294901760
    %v1362 = vsub.f32 %v124, %v1361
    %v1363 = vand.u32 %v1362, 4294901760
    %v1364 = vsub.f32 %v1362, %v1363
    %v1365 = vand.u32 %v1364, 4294901760
    %1366 = vmatpush1.msra.mxu0 %v1365
    %1367 = vmatprep.subr.mxu0 0.0
    %v1368 = vand.u32 %v125, 4294901760
    %v1369 = vsub.f32 %v125, %v1368
    %v1370 = vand.u32 %v1369, 4294901760
    %v1371 = vsub.f32 %v1369, %v1370
    %v1372 = vand.u32 %v1371, 4294901760
    %1373 = vmatpush1.msra.mxu0 %v1372
    %1374 = vmatprep.subr.mxu0 0.0
    %v1375 = vand.u32 %v126, 4294901760
    %v1376 = vsub.f32 %v126, %v1375
    %v1377 = vand.u32 %v1376, 4294901760
    %v1378 = vsub.f32 %v1376, %v1377
    %v1379 = vand.u32 %v1378, 4294901760
    %1380 = vmatpush1.msra.mxu0 %v1379
    %1381 = vmatprep.subr.mxu0 0.0
    %v1382 = vand.u32 %v127, 4294901760
    %v1383 = vsub.f32 %v127, %v1382
    %v1384 = vand.u32 %v1383, 4294901760
    %v1385 = vsub.f32 %v1383, %v1384
    %v1386 = vand.u32 %v1385, 4294901760
    %1387 = vmatpush1.msra.mxu0 %v1386
    %1388 = vmatprep.subr.mxu0 0.0
    %v1389 = vand.u32 %v128, 4294901760
    %v1390 = vsub.f32 %v128, %v1389
    %v1391 = vand.u32 %v1390, 4294901760
    %v1392 = vsub.f32 %v1390, %v1391
    %v1393 = vand.u32 %v1392, 4294901760
    %1394 = vmatpush1.msra.mxu0 %v1393
    %1395 = vmatprep.subr.mxu0 0.0
    %v1396 = vand.u32 %v129, 4294901760
    %v1397 = vsub.f32 %v129, %v1396
    %v1398 = vand.u32 %v1397, 4294901760
    %v1399 = vsub.f32 %v1397, %v1398
    %v1400 = vand.u32 %v1399, 4294901760
    %1401 = vmatpush1.msra.mxu0 %v1400
    %1402 = vmatprep.subr.mxu0 0.0
    %v1403 = vand.u32 %v130, 4294901760
    %v1404 = vsub.f32 %v130, %v1403
    %v1405 = vand.u32 %v1404, 4294901760
    %v1406 = vsub.f32 %v1404, %v1405
    %v1407 = vand.u32 %v1406, 4294901760
    %1408 = vmatpush1.msra.mxu0 %v1407
    %1409 = vmatprep.subr.mxu0 0.0
    %v1410 = vand.u32 %v131, 4294901760
    %v1411 = vsub.f32 %v131, %v1410
    %v1412 = vand.u32 %v1411, 4294901760
    %v1413 = vsub.f32 %v1411, %v1412
    %v1414 = vand.u32 %v1413, 4294901760
    %1415 = vmatpush1.msra.mxu0 %v1414
    %1416 = vmatprep.subr.mxu0 0.0
    %v1417 = vand.u32 %v132, 4294901760
    %v1418 = vsub.f32 %v132, %v1417
    %v1419 = vand.u32 %v1418, 4294901760
    %v1420 = vsub.f32 %v1418, %v1419
    %v1421 = vand.u32 %v1420, 4294901760
    %1422 = vmatpush1.msra.mxu0 %v1421
    %1423 = vmatprep.subr.mxu0 0.0
    %v1424 = vand.u32 %v133, 4294901760
    %v1425 = vsub.f32 %v133, %v1424
    %v1426 = vand.u32 %v1425, 4294901760
    %v1427 = vsub.f32 %v1425, %v1426
    %v1428 = vand.u32 %v1427, 4294901760
    %1429 = vmatpush1.msra.mxu0 %v1428
    %1430 = vmatprep.subr.mxu0 0.0
    %v1431 = vand.u32 %v134, 4294901760
    %v1432 = vsub.f32 %v134, %v1431
    %v1433 = vand.u32 %v1432, 4294901760
    %v1434 = vsub.f32 %v1432, %v1433
    %v1435 = vand.u32 %v1434, 4294901760
    %1436 = vmatpush1.msra.mxu0 %v1435
    %1437 = vmatprep.subr.mxu0 0.0
    %v1438 = vand.u32 %v135, 4294901760
    %v1439 = vsub.f32 %v135, %v1438
    %v1440 = vand.u32 %v1439, 4294901760
    %v1441 = vsub.f32 %v1439, %v1440
    %v1442 = vand.u32 %v1441, 4294901760
    %1443 = vmatpush1.msra.mxu0 %v1442
    %1444 = vmatprep.subr.mxu0 0.0
    %1445 = vmatpush1.msra.mxu0 0.0
    %1446 = vmatprep.subr.mxu0 0.0
    %1447 = vmatpush1.msra.mxu0 0.0
    %1448 = vmatprep.subr.mxu0 0.0
    %1449 = vmatpush1.msra.mxu0 0.0
    %1450 = vmatprep.subr.mxu0 0.0
    %1451 = vmatpush1.msra.mxu0 0.0
    %1452 = vmatprep.subr.mxu0 0.0
    %1453 = vmatpush1.msra.mxu0 0.0
    %1454 = vmatprep.subr.mxu0 0.0
    %1455 = vmatpush1.msra.mxu0 0.0
    %1456 = vmatprep.subr.mxu0 0.0
    %1457 = vmatpush1.msra.mxu0 0.0
    %1458 = vmatprep.subr.mxu0 0.0
    %1459 = vmatpush1.msra.mxu0 0.0
    %1460 = vmatprep.subr.mxu0 0.0
    %1461 = vmatpush1.msra.mxu0 0.0
    %1462 = vmatprep.subr.mxu0 0.0
    %1463 = vmatpush1.msra.mxu0 0.0
    %1464 = vmatprep.subr.mxu0 0.0
    %1465 = vmatpush1.msra.mxu0 0.0
    %1466 = vmatprep.subr.mxu0 0.0
    %1467 = vmatpush1.msra.mxu0 0.0
    %1468 = vmatprep.subr.mxu0 0.0
    %1469 = vmatpush1.msra.mxu0 0.0
    %1470 = vmatprep.subr.mxu0 0.0
    %1471 = vmatpush1.msra.mxu0 0.0
    %1472 = vmatprep.subr.mxu0 0.0
    %1473 = vmatpush1.msra.mxu0 0.0
    %1474 = vmatprep.subr.mxu0 0.0
    %1475 = vmatpush1.msra.mxu0 0.0
    %1476 = vmatprep.mubr.f32.mxu0 0.0
    %v1477 = vand.u32 %v1240, 4294901760
    %1478 = vmatmul.mubr.f32.gmra.mrb[0].mxu0 %v1477
    %v1479 = vpop.f32.mrb[0].mxu0
    %v1480 = vadd.f32 %v1329, %v1479
    %v1481 = vpop.f32.mrb[0].mxu0
    %1482 = vdwg.mxu0
    %1483 = vmatprep.subr.mxu0 0.0
    %v1484 = vand.u32 %v120, 4294901760
    %v1485 = vsub.f32 %v120, %v1484
    %1486 = vmatpush1.msra.mxu0 %v1485
    %1487 = vmatprep.subr.mxu0 0.0
    %v1488 = vand.u32 %v121, 4294901760
    %v1489 = vsub.f32 %v121, %v1488
    %1490 = vmatpush1.msra.mxu0 %v1489
    %1491 = vmatprep.subr.mxu0 0.0
    %v1492 = vand.u32 %v122, 4294901760
    %v1493 = vsub.f32 %v122, %v1492
    %1494 = vmatpush1.msra.mxu0 %v1493
    %1495 = vmatprep.subr.mxu0 0.0
    %v1496 = vand.u32 %v123, 4294901760
    %v1497 = vsub.f32 %v123, %v1496
    %1498 = vmatpush1.msra.mxu0 %v1497
    %1499 = vmatprep.subr.mxu0 0.0
    %v1500 = vand.u32 %v124, 4294901760
    %v1501 = vsub.f32 %v124, %v1500
    %1502 = vmatpush1.msra.mxu0 %v1501
    %1503 = vmatprep.subr.mxu0 0.0
    %v1504 = vand.u32 %v125, 4294901760
    %v1505 = vsub.f32 %v125, %v1504
    %1506 = vmatpush1.msra.mxu0 %v1505
    %1507 = vmatprep.subr.mxu0 0.0
    %v1508 = vand.u32 %v126, 4294901760
    %v1509 = vsub.f32 %v126, %v1508
    %1510 = vmatpush1.msra.mxu0 %v1509
    %1511 = vmatprep.subr.mxu0 0.0
    %v1512 = vand.u32 %v127, 4294901760
    %v1513 = vsub.f32 %v127, %v1512
    %1514 = vmatpush1.msra.mxu0 %v1513
    %1515 = vmatprep.subr.mxu0 0.0
    %v1516 = vand.u32 %v128, 4294901760
    %v1517 = vsub.f32 %v128, %v1516
    %1518 = vmatpush1.msra.mxu0 %v1517
    %1519 = vmatprep.subr.mxu0 0.0
    %v1520 = vand.u32 %v129, 4294901760
    %v1521 = vsub.f32 %v129, %v1520
    %1522 = vmatpush1.msra.mxu0 %v1521
    %1523 = vmatprep.subr.mxu0 0.0
    %v1524 = vand.u32 %v130, 4294901760
    %v1525 = vsub.f32 %v130, %v1524
    %1526 = vmatpush1.msra.mxu0 %v1525
    %1527 = vmatprep.subr.mxu0 0.0
    %v1528 = vand.u32 %v131, 4294901760
    %v1529 = vsub.f32 %v131, %v1528
    %1530 = vmatpush1.msra.mxu0 %v1529
    %1531 = vmatprep.subr.mxu0 0.0
    %v1532 = vand.u32 %v132, 4294901760
    %v1533 = vsub.f32 %v132, %v1532
    %1534 = vmatpush1.msra.mxu0 %v1533
    %1535 = vmatprep.subr.mxu0 0.0
    %v1536 = vand.u32 %v133, 4294901760
    %v1537 = vsub.f32 %v133, %v1536
    %1538 = vmatpush1.msra.mxu0 %v1537
    %1539 = vmatprep.subr.mxu0 0.0
    %v1540 = vand.u32 %v134, 4294901760
    %v1541 = vsub.f32 %v134, %v1540
    %1542 = vmatpush1.msra.mxu0 %v1541
    %1543 = vmatprep.subr.mxu0 0.0
    %v1544 = vand.u32 %v135, 4294901760
    %v1545 = vsub.f32 %v135, %v1544
    %1546 = vmatpush1.msra.mxu0 %v1545
    %1547 = vmatprep.subr.mxu0 0.0
    %1548 = vmatpush1.msra.mxu0 0.0
    %1549 = vmatprep.subr.mxu0 0.0
    %1550 = vmatpush1.msra.mxu0 0.0
    %1551 = vmatprep.subr.mxu0 0.0
    %1552 = vmatpush1.msra.mxu0 0.0
    %1553 = vmatprep.subr.mxu0 0.0
    %1554 = vmatpush1.msra.mxu0 0.0
    %1555 = vmatprep.subr.mxu0 0.0
    %1556 = vmatpush1.msra.mxu0 0.0
    %1557 = vmatprep.subr.mxu0 0.0
    %1558 = vmatpush1.msra.mxu0 0.0
    %1559 = vmatprep.subr.mxu0 0.0
    %1560 = vmatpush1.msra.mxu0 0.0
    %1561 = vmatprep.subr.mxu0 0.0
    %1562 = vmatpush1.msra.mxu0 0.0
    %1563 = vmatprep.subr.mxu0 0.0
    %1564 = vmatpush1.msra.mxu0 0.0
    %1565 = vmatprep.subr.mxu0 0.0
    %1566 = vmatpush1.msra.mxu0 0.0
    %1567 = vmatprep.subr.mxu0 0.0
    %1568 = vmatpush1.msra.mxu0 0.0
    %1569 = vmatprep.subr.mxu0 0.0
    %1570 = vmatpush1.msra.mxu0 0.0
    %1571 = vmatprep.subr.mxu0 0.0
    %1572 = vmatpush1.msra.mxu0 0.0
    %1573 = vmatprep.subr.mxu0 0.0
    %1574 = vmatpush1.msra.mxu0 0.0
    %1575 = vmatprep.subr.mxu0 0.0
    %1576 = vmatpush1.msra.mxu0 0.0
    %1577 = vmatprep.subr.mxu0 0.0
    %1578 = vmatpush1.msra.mxu0 0.0
    %1579 = vmatprep.mubr.f32.mxu0 0.0
    %v1580 = vand.u32 %v1240, 4294901760
    %v1581 = vsub.f32 %v1240, %v1580
    %1582 = vmatmul.mubr.f32.gmra.mrb[0].mxu0 %v1581
    %v1583 = vpop.f32.mrb[0].mxu0
    %v1584 = vadd.f32 %v1480, %v1583
    %v1585 = vpop.f32.mrb[0].mxu0
    %1586 = vdwg.mxu0
    %1587 = vmatprep.subr.mxu0 0.0
    %v1588 = vand.u32 %v120, 4294901760
    %1589 = vmatpush1.msra.mxu0 %v1588
    %1590 = vmatprep.subr.mxu0 0.0
    %v1591 = vand.u32 %v121, 4294901760
    %1592 = vmatpush1.msra.mxu0 %v1591
    %1593 = vmatprep.subr.mxu0 0.0
    %v1594 = vand.u32 %v122, 4294901760
    %1595 = vmatpush1.msra.mxu0 %v1594
    %1596 = vmatprep.subr.mxu0 0.0
    %v1597 = vand.u32 %v123, 4294901760
    %1598 = vmatpush1.msra.mxu0 %v1597
    %1599 = vmatprep.subr.mxu0 0.0
    %v1600 = vand.u32 %v124, 4294901760
    %1601 = vmatpush1.msra.mxu0 %v1600
    %1602 = vmatprep.subr.mxu0 0.0
    %v1603 = vand.u32 %v125, 4294901760
    %1604 = vmatpush1.msra.mxu0 %v1603
    %1605 = vmatprep.subr.mxu0 0.0
    %v1606 = vand.u32 %v126, 4294901760
    %1607 = vmatpush1.msra.mxu0 %v1606
    %1608 = vmatprep.subr.mxu0 0.0
    %v1609 = vand.u32 %v127, 4294901760
    %1610 = vmatpush1.msra.mxu0 %v1609
    %1611 = vmatprep.subr.mxu0 0.0
    %v1612 = vand.u32 %v128, 4294901760
    %1613 = vmatpush1.msra.mxu0 %v1612
    %1614 = vmatprep.subr.mxu0 0.0
    %v1615 = vand.u32 %v129, 4294901760
    %1616 = vmatpush1.msra.mxu0 %v1615
    %1617 = vmatprep.subr.mxu0 0.0
    %v1618 = vand.u32 %v130, 4294901760
    %1619 = vmatpush1.msra.mxu0 %v1618
    %1620 = vmatprep.subr.mxu0 0.0
    %v1621 = vand.u32 %v131, 4294901760
    %1622 = vmatpush1.msra.mxu0 %v1621
    %1623 = vmatprep.subr.mxu0 0.0
    %v1624 = vand.u32 %v132, 4294901760
    %1625 = vmatpush1.msra.mxu0 %v1624
    %1626 = vmatprep.subr.mxu0 0.0
    %v1627 = vand.u32 %v133, 4294901760
    %1628 = vmatpush1.msra.mxu0 %v1627
    %1629 = vmatprep.subr.mxu0 0.0
    %v1630 = vand.u32 %v134, 4294901760
    %1631 = vmatpush1.msra.mxu0 %v1630
    %1632 = vmatprep.subr.mxu0 0.0
    %v1633 = vand.u32 %v135, 4294901760
    %1634 = vmatpush1.msra.mxu0 %v1633
    %1635 = vmatprep.subr.mxu0 0.0
    %1636 = vmatpush1.msra.mxu0 0.0
    %1637 = vmatprep.subr.mxu0 0.0
    %1638 = vmatpush1.msra.mxu0 0.0
    %1639 = vmatprep.subr.mxu0 0.0
    %1640 = vmatpush1.msra.mxu0 0.0
    %1641 = vmatprep.subr.mxu0 0.0
    %1642 = vmatpush1.msra.mxu0 0.0
    %1643 = vmatprep.subr.mxu0 0.0
    %1644 = vmatpush1.msra.mxu0 0.0
    %1645 = vmatprep.subr.mxu0 0.0
    %1646 = vmatpush1.msra.mxu0 0.0
    %1647 = vmatprep.subr.mxu0 0.0
    %1648 = vmatpush1.msra.mxu0 0.0
    %1649 = vmatprep.subr.mxu0 0.0
    %1650 = vmatpush1.msra.mxu0 0.0
    %1651 = vmatprep.subr.mxu0 0.0
    %1652 = vmatpush1.msra.mxu0 0.0
    %1653 = vmatprep.subr.mxu0 0.0
    %1654 = vmatpush1.msra.mxu0 0.0
    %1655 = vmatprep.subr.mxu0 0.0
    %1656 = vmatpush1.msra.mxu0 0.0
    %1657 = vmatprep.subr.mxu0 0.0
    %1658 = vmatpush1.msra.mxu0 0.0
    %1659 = vmatprep.subr.mxu0 0.0
    %1660 = vmatpush1.msra.mxu0 0.0
    %1661 = vmatprep.subr.mxu0 0.0
    %1662 = vmatpush1.msra.mxu0 0.0
    %1663 = vmatprep.subr.mxu0 0.0
    %1664 = vmatpush1.msra.mxu0 0.0
    %1665 = vmatprep.subr.mxu0 0.0
    %1666 = vmatpush1.msra.mxu0 0.0
    %1667 = vmatprep.mubr.f32.mxu0 0.0
    %v1668 = vand.u32 %v1240, 4294901760
    %v1669 = vsub.f32 %v1240, %v1668
    %v1670 = vand.u32 %v1669, 4294901760
    %1671 = vmatmul.mubr.f32.gmra.mrb[0].mxu0 %v1670
    %v1672 = vpop.f32.mrb[0].mxu0
    %v1673 = vadd.f32 %v1584, %v1672
    %v1674 = vpop.f32.mrb[0].mxu0
    %1675 = vdwg.mxu0
    %1676 = vmatprep.subr.mxu0 0.0
    %v1677 = vand.u32 %v120, 4294901760
    %v1678 = vsub.f32 %v120, %v1677
    %v1679 = vand.u32 %v1678, 4294901760
    %1680 = vmatpush1.msra.mxu0 %v1679
    %1681 = vmatprep.subr.mxu0 0.0
    %v1682 = vand.u32 %v121, 4294901760
    %v1683 = vsub.f32 %v121, %v1682
    %v1684 = vand.u32 %v1683, 4294901760
    %1685 = vmatpush1.msra.mxu0 %v1684
    %1686 = vmatprep.subr.mxu0 0.0
    %v1687 = vand.u32 %v122, 4294901760
    %v1688 = vsub.f32 %v122, %v1687
    %v1689 = vand.u32 %v1688, 4294901760
    %1690 = vmatpush1.msra.mxu0 %v1689
    %1691 = vmatprep.subr.mxu0 0.0
    %v1692 = vand.u32 %v123, 4294901760
    %v1693 = vsub.f32 %v123, %v1692
    %v1694 = vand.u32 %v1693, 4294901760
    %1695 = vmatpush1.msra.mxu0 %v1694
    %1696 = vmatprep.subr.mxu0 0.0
    %v1697 = vand.u32 %v124, 4294901760
    %v1698 = vsub.f32 %v124, %v1697
    %v1699 = vand.u32 %v1698, 4294901760
    %1700 = vmatpush1.msra.mxu0 %v1699
    %1701 = vmatprep.subr.mxu0 0.0
    %v1702 = vand.u32 %v125, 4294901760
    %v1703 = vsub.f32 %v125, %v1702
    %v1704 = vand.u32 %v1703, 4294901760
    %1705 = vmatpush1.msra.mxu0 %v1704
    %1706 = vmatprep.subr.mxu0 0.0
    %v1707 = vand.u32 %v126, 4294901760
    %v1708 = vsub.f32 %v126, %v1707
    %v1709 = vand.u32 %v1708, 4294901760
    %1710 = vmatpush1.msra.mxu0 %v1709
    %1711 = vmatprep.subr.mxu0 0.0
    %v1712 = vand.u32 %v127, 4294901760
    %v1713 = vsub.f32 %v127, %v1712
    %v1714 = vand.u32 %v1713, 4294901760
    %1715 = vmatpush1.msra.mxu0 %v1714
    %1716 = vmatprep.subr.mxu0 0.0
    %v1717 = vand.u32 %v128, 4294901760
    %v1718 = vsub.f32 %v128, %v1717
    %v1719 = vand.u32 %v1718, 4294901760
    %1720 = vmatpush1.msra.mxu0 %v1719
    %1721 = vmatprep.subr.mxu0 0.0
    %v1722 = vand.u32 %v129, 4294901760
    %v1723 = vsub.f32 %v129, %v1722
    %v1724 = vand.u32 %v1723, 4294901760
    %1725 = vmatpush1.msra.mxu0 %v1724
    %1726 = vmatprep.subr.mxu0 0.0
    %v1727 = vand.u32 %v130, 4294901760
    %v1728 = vsub.f32 %v130, %v1727
    %v1729 = vand.u32 %v1728, 4294901760
    %1730 = vmatpush1.msra.mxu0 %v1729
    %1731 = vmatprep.subr.mxu0 0.0
    %v1732 = vand.u32 %v131, 4294901760
    %v1733 = vsub.f32 %v131, %v1732
    %v1734 = vand.u32 %v1733, 4294901760
    %1735 = vmatpush1.msra.mxu0 %v1734
    %1736 = vmatprep.subr.mxu0 0.0
    %v1737 = vand.u32 %v132, 4294901760
    %v1738 = vsub.f32 %v132, %v1737
    %v1739 = vand.u32 %v1738, 4294901760
    %1740 = vmatpush1.msra.mxu0 %v1739
    %1741 = vmatprep.subr.mxu0 0.0
    %v1742 = vand.u32 %v133, 4294901760
    %v1743 = vsub.f32 %v133, %v1742
    %v1744 = vand.u32 %v1743, 4294901760
    %1745 = vmatpush1.msra.mxu0 %v1744
    %1746 = vmatprep.subr.mxu0 0.0
    %v1747 = vand.u32 %v134, 4294901760
    %v1748 = vsub.f32 %v134, %v1747
    %v1749 = vand.u32 %v1748, 4294901760
    %1750 = vmatpush1.msra.mxu0 %v1749
    %1751 = vmatprep.subr.mxu0 0.0
    %v1752 = vand.u32 %v135, 4294901760
    %v1753 = vsub.f32 %v135, %v1752
    %v1754 = vand.u32 %v1753, 4294901760
    %1755 = vmatpush1.msra.mxu0 %v1754
    %1756 = vmatprep.subr.mxu0 0.0
    %1757 = vmatpush1.msra.mxu0 0.0
    %1758 = vmatprep.subr.mxu0 0.0
    %1759 = vmatpush1.msra.mxu0 0.0
    %1760 = vmatprep.subr.mxu0 0.0
    %1761 = vmatpush1.msra.mxu0 0.0
    %1762 = vmatprep.subr.mxu0 0.0
    %1763 = vmatpush1.msra.mxu0 0.0
    %1764 = vmatprep.subr.mxu0 0.0
    %1765 = vmatpush1.msra.mxu0 0.0
    %1766 = vmatprep.subr.mxu0 0.0
    %1767 = vmatpush1.msra.mxu0 0.0
    %1768 = vmatprep.subr.mxu0 0.0
    %1769 = vmatpush1.msra.mxu0 0.0
    %1770 = vmatprep.subr.mxu0 0.0
    %1771 = vmatpush1.msra.mxu0 0.0
    %1772 = vmatprep.subr.mxu0 0.0
    %1773 = vmatpush1.msra.mxu0 0.0
    %1774 = vmatprep.subr.mxu0 0.0
    %1775 = vmatpush1.msra.mxu0 0.0
    %1776 = vmatprep.subr.mxu0 0.0
    %1777 = vmatpush1.msra.mxu0 0.0
    %1778 = vmatprep.subr.mxu0 0.0
    %1779 = vmatpush1.msra.mxu0 0.0
    %1780 = vmatprep.subr.mxu0 0.0
    %1781 = vmatpush1.msra.mxu0 0.0
    %1782 = vmatprep.subr.mxu0 0.0
    %1783 = vmatpush1.msra.mxu0 0.0
    %1784 = vmatprep.subr.mxu0 0.0
    %1785 = vmatpush1.msra.mxu0 0.0
    %1786 = vmatprep.subr.mxu0 0.0
    %1787 = vmatpush1.msra.mxu0 0.0
    %1788 = vmatprep.mubr.f32.mxu0 0.0
    %v1789 = vand.u32 %v1240, 4294901760
    %1790 = vmatmul.mubr.f32.gmra.mrb[0].mxu0 %v1789
    %v1791 = vpop.f32.mrb[0].mxu0
    %v1792 = vadd.f32 %v1673, %v1791
    %v1793 = vpop.f32.mrb[0].mxu0
    %1794 = vdwg.mxu0
    %1795 = vmatprep.subr.mxu0 0.0
    %v1796 = vand.u32 %v120, 4294901760
    %1797 = vmatpush1.msra.mxu0 %v1796
    %1798 = vmatprep.subr.mxu0 0.0
    %v1799 = vand.u32 %v121, 4294901760
    %1800 = vmatpush1.msra.mxu0 %v1799
    %1801 = vmatprep.subr.mxu0 0.0
    %v1802 = vand.u32 %v122, 4294901760
    %1803 = vmatpush1.msra.mxu0 %v1802
    %1804 = vmatprep.subr.mxu0 0.0
    %v1805 = vand.u32 %v123, 4294901760
    %1806 = vmatpush1.msra.mxu0 %v1805
    %1807 = vmatprep.subr.mxu0 0.0
    %v1808 = vand.u32 %v124, 4294901760
    %1809 = vmatpush1.msra.mxu0 %v1808
    %1810 = vmatprep.subr.mxu0 0.0
    %v1811 = vand.u32 %v125, 4294901760
    %1812 = vmatpush1.msra.mxu0 %v1811
    %1813 = vmatprep.subr.mxu0 0.0
    %v1814 = vand.u32 %v126, 4294901760
    %1815 = vmatpush1.msra.mxu0 %v1814
    %1816 = vmatprep.subr.mxu0 0.0
    %v1817 = vand.u32 %v127, 4294901760
    %1818 = vmatpush1.msra.mxu0 %v1817
    %1819 = vmatprep.subr.mxu0 0.0
    %v1820 = vand.u32 %v128, 4294901760
    %1821 = vmatpush1.msra.mxu0 %v1820
    %1822 = vmatprep.subr.mxu0 0.0
    %v1823 = vand.u32 %v129, 4294901760
    %1824 = vmatpush1.msra.mxu0 %v1823
    %1825 = vmatprep.subr.mxu0 0.0
    %v1826 = vand.u32 %v130, 4294901760
    %1827 = vmatpush1.msra.mxu0 %v1826
    %1828 = vmatprep.subr.mxu0 0.0
    %v1829 = vand.u32 %v131, 4294901760
    %1830 = vmatpush1.msra.mxu0 %v1829
    %1831 = vmatprep.subr.mxu0 0.0
    %v1832 = vand.u32 %v132, 4294901760
    %1833 = vmatpush1.msra.mxu0 %v1832
    %1834 = vmatprep.subr.mxu0 0.0
    %v1835 = vand.u32 %v133, 4294901760
    %1836 = vmatpush1.msra.mxu0 %v1835
    %1837 = vmatprep.subr.mxu0 0.0
    %v1838 = vand.u32 %v134, 4294901760
    %1839 = vmatpush1.msra.mxu0 %v1838
    %1840 = vmatprep.subr.mxu0 0.0
    %v1841 = vand.u32 %v135, 4294901760
    %1842 = vmatpush1.msra.mxu0 %v1841
    %1843 = vmatprep.subr.mxu0 0.0
    %1844 = vmatpush1.msra.mxu0 0.0
    %1845 = vmatprep.subr.mxu0 0.0
    %1846 = vmatpush1.msra.mxu0 0.0
    %1847 = vmatprep.subr.mxu0 0.0
    %1848 = vmatpush1.msra.mxu0 0.0
    %1849 = vmatprep.subr.mxu0 0.0
    %1850 = vmatpush1.msra.mxu0 0.0
    %1851 = vmatprep.subr.mxu0 0.0
    %1852 = vmatpush1.msra.mxu0 0.0
    %1853 = vmatprep.subr.mxu0 0.0
    %1854 = vmatpush1.msra.mxu0 0.0
    %1855 = vmatprep.subr.mxu0 0.0
    %1856 = vmatpush1.msra.mxu0 0.0
    %1857 = vmatprep.subr.mxu0 0.0
    %1858 = vmatpush1.msra.mxu0 0.0
    %1859 = vmatprep.subr.mxu0 0.0
    %1860 = vmatpush1.msra.mxu0 0.0
    %1861 = vmatprep.subr.mxu0 0.0
    %1862 = vmatpush1.msra.mxu0 0.0
    %1863 = vmatprep.subr.mxu0 0.0
    %1864 = vmatpush1.msra.mxu0 0.0
    %1865 = vmatprep.subr.mxu0 0.0
    %1866 = vmatpush1.msra.mxu0 0.0
    %1867 = vmatprep.subr.mxu0 0.0
    %1868 = vmatpush1.msra.mxu0 0.0
    %1869 = vmatprep.subr.mxu0 0.0
    %1870 = vmatpush1.msra.mxu0 0.0
    %1871 = vmatprep.subr.mxu0 0.0
    %1872 = vmatpush1.msra.mxu0 0.0
    %1873 = vmatprep.subr.mxu0 0.0
    %1874 = vmatpush1.msra.mxu0 0.0
    %1875 = vmatprep.mubr.f32.mxu0 0.0
    %v1876 = vand.u32 %v1240, 4294901760
    %1877 = vmatmul.mubr.f32.gmra.mrb[0].mxu0 %v1876
    %v1878 = vpop.f32.mrb[0].mxu0
    %v1879 = vadd.f32 %v1792, %v1878
    %v1880 = vpop.f32.mrb[0].mxu0
    %1881 = vdwg.mxu0
    %v1882 = vmul.f32 %v1879, 0.032258064
    %v1883 = vrsqrt.pop %v1882
    %v1884 = vmul.f32 %v1882, %v1883
    %vm1885 = vcmp.eq.f32.partialorder %v1882, inf
    %v1886 = vsel %vm1885, %v1882, %v1884
    %vm1887 = vcmp.eq.f32.partialorder %v1882, 0.0
    %v1888 = vand.u32 %v1882, 2147483648
    %v1889 = vsel %vm1887, %v1888, %v1886
    %v1890 = vadd.f32 %v1889, 1e-06
    %v1891 = vrcp.pop %v1890
    %v1892 = vstv %s18
    %v1893 = vmul.f32 %v1892, %v1891
    %v1895 = vsel %vm785, %v1893, 0
    %1897 = vmatprep.subr.mxu0 0.0
    %v1898 = vand.u32 %v791, 4294901760
    %1899 = vmatpush1.msra.mxu0 %v1898
    %1900 = vmatprep.subr.mxu0 0.0
    %1901 = vmatpush1.msra.mxu0 0.0
    %1902 = vmatprep.subr.mxu0 0.0
    %1903 = vmatpush1.msra.mxu0 0.0
    %1904 = vmatprep.subr.mxu0 0.0
    %1905 = vmatpush1.msra.mxu0 0.0
    %1906 = vmatprep.subr.mxu0 0.0
    %1907 = vmatpush1.msra.mxu0 0.0
    %1908 = vmatprep.subr.mxu0 0.0
    %1909 = vmatpush1.msra.mxu0 0.0
    %1910 = vmatprep.subr.mxu0 0.0
    %1911 = vmatpush1.msra.mxu0 0.0
    %1912 = vmatprep.subr.mxu0 0.0
    %1913 = vmatpush1.msra.mxu0 0.0
    %1914 = vmatprep.subr.mxu0 0.0
    %1915 = vmatpush1.msra.mxu0 0.0
    %1916 = vmatprep.subr.mxu0 0.0
    %1917 = vmatpush1.msra.mxu0 0.0
    %1918 = vmatprep.subr.mxu0 0.0
    %1919 = vmatpush1.msra.mxu0 0.0
    %1920 = vmatprep.subr.mxu0 0.0
    %1921 = vmatpush1.msra.mxu0 0.0
    %1922 = vmatprep.subr.mxu0 0.0
    %1923 = vmatpush1.msra.mxu0 0.0
    %1924 = vmatprep.subr.mxu0 0.0
    %1925 = vmatpush1.msra.mxu0 0.0
    %1926 = vmatprep.subr.mxu0 0.0
    %1927 = vmatpush1.msra.mxu0 0.0
    %1928 = vmatprep.subr.mxu0 0.0
    %1929 = vmatpush1.msra.mxu0 0.0
    %1930 = vmatprep.subr.mxu0 0.0
    %1931 = vmatpush1.msra.mxu0 0.0
    %1932 = vmatprep.subr.mxu0 0.0
    %1933 = vmatpush1.msra.mxu0 0.0
    %1934 = vmatprep.subr.mxu0 0.0
    %1935 = vmatpush1.msra.mxu0 0.0
    %1936 = vmatprep.subr.mxu0 0.0
    %1937 = vmatpush1.msra.mxu0 0.0
    %1938 = vmatprep.subr.mxu0 0.0
    %1939 = vmatpush1.msra.mxu0 0.0
    %1940 = vmatprep.subr.mxu0 0.0
    %1941 = vmatpush1.msra.mxu0 0.0
    %1942 = vmatprep.subr.mxu0 0.0
    %1943 = vmatpush1.msra.mxu0 0.0
    %1944 = vmatprep.subr.mxu0 0.0
    %1945 = vmatpush1.msra.mxu0 0.0
    %1946 = vmatprep.subr.mxu0 0.0
    %1947 = vmatpush1.msra.mxu0 0.0
    %1948 = vmatprep.subr.mxu0 0.0
    %1949 = vmatpush1.msra.mxu0 0.0
    %1950 = vmatprep.subr.mxu0 0.0
    %1951 = vmatpush1.msra.mxu0 0.0
    %1952 = vmatprep.subr.mxu0 0.0
    %1953 = vmatpush1.msra.mxu0 0.0
    %1954 = vmatprep.subr.mxu0 0.0
    %1955 = vmatpush1.msra.mxu0 0.0
    %1956 = vmatprep.subr.mxu0 0.0
    %1957 = vmatpush1.msra.mxu0 0.0
    %1958 = vmatprep.subr.mxu0 0.0
    %1959 = vmatpush1.msra.mxu0 0.0
    %1960 = vmatprep.subr.mxu0 0.0
    %1961 = vmatpush1.msra.mxu0 0.0
    %1962 = vmatprep.mubr.f32.mxu0 0.0
    %v1963 = vand.u32 %v1895, 4294901760
    %v1964 = vsub.f32 %v1895, %v1963
    %v1965 = vand.u32 %v1964, 4294901760
    %v1966 = vsub.f32 %v1964, %v1965
    %v1967 = vand.u32 %v1966, 4294901760
    %1968 = vmatmul.mubr.f32.gmra.mrb[0].mxu0 %v1967
    %v1969 = vpop.f32.mrb[0].mxu0
    %v1970 = vadd.f32 0.0, %v1969
    %v1971 = vpop.f32.mrb[0].mxu0
    %1972 = vdwg.mxu0
    %1973 = vmatprep.subr.mxu0 0.0
    %v1974 = vand.u32 %v791, 4294901760
    %v1975 = vsub.f32 %v791, %v1974
    %v1976 = vand.u32 %v1975, 4294901760
    %v1977 = vsub.f32 %v1975, %v1976
    %v1978 = vand.u32 %v1977, 4294901760
    %1979 = vmatpush1.msra.mxu0 %v1978
    %1980 = vmatprep.subr.mxu0 0.0
    %1981 = vmatpush1.msra.mxu0 0.0
    %1982 = vmatprep.subr.mxu0 0.0
    %1983 = vmatpush1.msra.mxu0 0.0
    %1984 = vmatprep.subr.mxu0 0.0
    %1985 = vmatpush1.msra.mxu0 0.0
    %1986 = vmatprep.subr.mxu0 0.0
    %1987 = vmatpush1.msra.mxu0 0.0
    %1988 = vmatprep.subr.mxu0 0.0
    %1989 = vmatpush1.msra.mxu0 0.0
    %1990 = vmatprep.subr.mxu0 0.0
    %1991 = vmatpush1.msra.mxu0 0.0
    %1992 = vmatprep.subr.mxu0 0.0
    %1993 = vmatpush1.msra.mxu0 0.0
    %1994 = vmatprep.subr.mxu0 0.0
    %1995 = vmatpush1.msra.mxu0 0.0
    %1996 = vmatprep.subr.mxu0 0.0
    %1997 = vmatpush1.msra.mxu0 0.0
    %1998 = vmatprep.subr.mxu0 0.0
    %1999 = vmatpush1.msra.mxu0 0.0
    %2000 = vmatprep.subr.mxu0 0.0
    %2001 = vmatpush1.msra.mxu0 0.0
    %2002 = vmatprep.subr.mxu0 0.0
    %2003 = vmatpush1.msra.mxu0 0.0
    %2004 = vmatprep.subr.mxu0 0.0
    %2005 = vmatpush1.msra.mxu0 0.0
    %2006 = vmatprep.subr.mxu0 0.0
    %2007 = vmatpush1.msra.mxu0 0.0
    %2008 = vmatprep.subr.mxu0 0.0
    %2009 = vmatpush1.msra.mxu0 0.0
    %2010 = vmatprep.subr.mxu0 0.0
    %2011 = vmatpush1.msra.mxu0 0.0
    %2012 = vmatprep.subr.mxu0 0.0
    %2013 = vmatpush1.msra.mxu0 0.0
    %2014 = vmatprep.subr.mxu0 0.0
    %2015 = vmatpush1.msra.mxu0 0.0
    %2016 = vmatprep.subr.mxu0 0.0
    %2017 = vmatpush1.msra.mxu0 0.0
    %2018 = vmatprep.subr.mxu0 0.0
    %2019 = vmatpush1.msra.mxu0 0.0
    %2020 = vmatprep.subr.mxu0 0.0
    %2021 = vmatpush1.msra.mxu0 0.0
    %2022 = vmatprep.subr.mxu0 0.0
    %2023 = vmatpush1.msra.mxu0 0.0
    %2024 = vmatprep.subr.mxu0 0.0
    %2025 = vmatpush1.msra.mxu0 0.0
    %2026 = vmatprep.subr.mxu0 0.0
    %2027 = vmatpush1.msra.mxu0 0.0
    %2028 = vmatprep.subr.mxu0 0.0
    %2029 = vmatpush1.msra.mxu0 0.0
    %2030 = vmatprep.subr.mxu0 0.0
    %2031 = vmatpush1.msra.mxu0 0.0
    %2032 = vmatprep.subr.mxu0 0.0
    %2033 = vmatpush1.msra.mxu0 0.0
    %2034 = vmatprep.subr.mxu0 0.0
    %2035 = vmatpush1.msra.mxu0 0.0
    %2036 = vmatprep.subr.mxu0 0.0
    %2037 = vmatpush1.msra.mxu0 0.0
    %2038 = vmatprep.subr.mxu0 0.0
    %2039 = vmatpush1.msra.mxu0 0.0
    %2040 = vmatprep.subr.mxu0 0.0
    %2041 = vmatpush1.msra.mxu0 0.0
    %2042 = vmatprep.mubr.f32.mxu0 0.0
    %v2043 = vand.u32 %v1895, 4294901760
    %2044 = vmatmul.mubr.f32.gmra.mrb[0].mxu0 %v2043
    %v2045 = vpop.f32.mrb[0].mxu0
    %v2046 = vadd.f32 %v1970, %v2045
    %v2047 = vpop.f32.mrb[0].mxu0
    %2048 = vdwg.mxu0
    %2049 = vmatprep.subr.mxu0 0.0
    %v2050 = vand.u32 %v791, 4294901760
    %v2051 = vsub.f32 %v791, %v2050
    %2052 = vmatpush1.msra.mxu0 %v2051
    %2053 = vmatprep.subr.mxu0 0.0
    %2054 = vmatpush1.msra.mxu0 0.0
    %2055 = vmatprep.subr.mxu0 0.0
    %2056 = vmatpush1.msra.mxu0 0.0
    %2057 = vmatprep.subr.mxu0 0.0
    %2058 = vmatpush1.msra.mxu0 0.0
    %2059 = vmatprep.subr.mxu0 0.0
    %2060 = vmatpush1.msra.mxu0 0.0
    %2061 = vmatprep.subr.mxu0 0.0
    %2062 = vmatpush1.msra.mxu0 0.0
    %2063 = vmatprep.subr.mxu0 0.0
    %2064 = vmatpush1.msra.mxu0 0.0
    %2065 = vmatprep.subr.mxu0 0.0
    %2066 = vmatpush1.msra.mxu0 0.0
    %2067 = vmatprep.subr.mxu0 0.0
    %2068 = vmatpush1.msra.mxu0 0.0
    %2069 = vmatprep.subr.mxu0 0.0
    %2070 = vmatpush1.msra.mxu0 0.0
    %2071 = vmatprep.subr.mxu0 0.0
    %2072 = vmatpush1.msra.mxu0 0.0
    %2073 = vmatprep.subr.mxu0 0.0
    %2074 = vmatpush1.msra.mxu0 0.0
    %2075 = vmatprep.subr.mxu0 0.0
    %2076 = vmatpush1.msra.mxu0 0.0
    %2077 = vmatprep.subr.mxu0 0.0
    %2078 = vmatpush1.msra.mxu0 0.0
    %2079 = vmatprep.subr.mxu0 0.0
    %2080 = vmatpush1.msra.mxu0 0.0
    %2081 = vmatprep.subr.mxu0 0.0
    %2082 = vmatpush1.msra.mxu0 0.0
    %2083 = vmatprep.subr.mxu0 0.0
    %2084 = vmatpush1.msra.mxu0 0.0
    %2085 = vmatprep.subr.mxu0 0.0
    %2086 = vmatpush1.msra.mxu0 0.0
    %2087 = vmatprep.subr.mxu0 0.0
    %2088 = vmatpush1.msra.mxu0 0.0
    %2089 = vmatprep.subr.mxu0 0.0
    %2090 = vmatpush1.msra.mxu0 0.0
    %2091 = vmatprep.subr.mxu0 0.0
    %2092 = vmatpush1.msra.mxu0 0.0
    %2093 = vmatprep.subr.mxu0 0.0
    %2094 = vmatpush1.msra.mxu0 0.0
    %2095 = vmatprep.subr.mxu0 0.0
    %2096 = vmatpush1.msra.mxu0 0.0
    %2097 = vmatprep.subr.mxu0 0.0
    %2098 = vmatpush1.msra.mxu0 0.0
    %2099 = vmatprep.subr.mxu0 0.0
    %2100 = vmatpush1.msra.mxu0 0.0
    %2101 = vmatprep.subr.mxu0 0.0
    %2102 = vmatpush1.msra.mxu0 0.0
    %2103 = vmatprep.subr.mxu0 0.0
    %2104 = vmatpush1.msra.mxu0 0.0
    %2105 = vmatprep.subr.mxu0 0.0
    %2106 = vmatpush1.msra.mxu0 0.0
    %2107 = vmatprep.subr.mxu0 0.0
    %2108 = vmatpush1.msra.mxu0 0.0
    %2109 = vmatprep.subr.mxu0 0.0
    %2110 = vmatpush1.msra.mxu0 0.0
    %2111 = vmatprep.subr.mxu0 0.0
    %2112 = vmatpush1.msra.mxu0 0.0
    %2113 = vmatprep.subr.mxu0 0.0
    %2114 = vmatpush1.msra.mxu0 0.0
    %2115 = vmatprep.mubr.f32.mxu0 0.0
    %v2116 = vand.u32 %v1895, 4294901760
    %v2117 = vsub.f32 %v1895, %v2116
    %2118 = vmatmul.mubr.f32.gmra.mrb[0].mxu0 %v2117
    %v2119 = vpop.f32.mrb[0].mxu0
    %v2120 = vadd.f32 %v2046, %v2119
    %v2121 = vpop.f32.mrb[0].mxu0
    %2122 = vdwg.mxu0
    %2123 = vmatprep.subr.mxu0 0.0
    %v2124 = vand.u32 %v791, 4294901760
    %2125 = vmatpush1.msra.mxu0 %v2124
    %2126 = vmatprep.subr.mxu0 0.0
    %2127 = vmatpush1.msra.mxu0 0.0
    %2128 = vmatprep.subr.mxu0 0.0
    %2129 = vmatpush1.msra.mxu0 0.0
    %2130 = vmatprep.subr.mxu0 0.0
    %2131 = vmatpush1.msra.mxu0 0.0
    %2132 = vmatprep.subr.mxu0 0.0
    %2133 = vmatpush1.msra.mxu0 0.0
    %2134 = vmatprep.subr.mxu0 0.0
    %2135 = vmatpush1.msra.mxu0 0.0
    %2136 = vmatprep.subr.mxu0 0.0
    %2137 = vmatpush1.msra.mxu0 0.0
    %2138 = vmatprep.subr.mxu0 0.0
    %2139 = vmatpush1.msra.mxu0 0.0
    %2140 = vmatprep.subr.mxu0 0.0
    %2141 = vmatpush1.msra.mxu0 0.0
    %2142 = vmatprep.subr.mxu0 0.0
    %2143 = vmatpush1.msra.mxu0 0.0
    %2144 = vmatprep.subr.mxu0 0.0
    %2145 = vmatpush1.msra.mxu0 0.0
    %2146 = vmatprep.subr.mxu0 0.0
    %2147 = vmatpush1.msra.mxu0 0.0
    %2148 = vmatprep.subr.mxu0 0.0
    %2149 = vmatpush1.msra.mxu0 0.0
    %2150 = vmatprep.subr.mxu0 0.0
    %2151 = vmatpush1.msra.mxu0 0.0
    %2152 = vmatprep.subr.mxu0 0.0
    %2153 = vmatpush1.msra.mxu0 0.0
    %2154 = vmatprep.subr.mxu0 0.0
    %2155 = vmatpush1.msra.mxu0 0.0
    %2156 = vmatprep.subr.mxu0 0.0
    %2157 = vmatpush1.msra.mxu0 0.0
    %2158 = vmatprep.subr.mxu0 0.0
    %2159 = vmatpush1.msra.mxu0 0.0
    %2160 = vmatprep.subr.mxu0 0.0
    %2161 = vmatpush1.msra.mxu0 0.0
    %2162 = vmatprep.subr.mxu0 0.0
    %2163 = vmatpush1.msra.mxu0 0.0
    %2164 = vmatprep.subr.mxu0 0.0
    %2165 = vmatpush1.msra.mxu0 0.0
    %2166 = vmatprep.subr.mxu0 0.0
    %2167 = vmatpush1.msra.mxu0 0.0
    %2168 = vmatprep.subr.mxu0 0.0
    %2169 = vmatpush1.msra.mxu0 0.0
    %2170 = vmatprep.subr.mxu0 0.0
    %2171 = vmatpush1.msra.mxu0 0.0
    %2172 = vmatprep.subr.mxu0 0.0
    %2173 = vmatpush1.msra.mxu0 0.0
    %2174 = vmatprep.subr.mxu0 0.0
    %2175 = vmatpush1.msra.mxu0 0.0
    %2176 = vmatprep.subr.mxu0 0.0
    %2177 = vmatpush1.msra.mxu0 0.0
    %2178 = vmatprep.subr.mxu0 0.0
    %2179 = vmatpush1.msra.mxu0 0.0
    %2180 = vmatprep.subr.mxu0 0.0
    %2181 = vmatpush1.msra.mxu0 0.0
    %2182 = vmatprep.subr.mxu0 0.0
    %2183 = vmatpush1.msra.mxu0 0.0
    %2184 = vmatprep.subr.mxu0 0.0
    %2185 = vmatpush1.msra.mxu0 0.0
    %2186 = vmatprep.subr.mxu0 0.0
    %2187 = vmatpush1.msra.mxu0 0.0
    %2188 = vmatprep.mubr.f32.mxu0 0.0
    %v2189 = vand.u32 %v1895, 4294901760
    %v2190 = vsub.f32 %v1895, %v2189
    %v2191 = vand.u32 %v2190, 4294901760
    %2192 = vmatmul.mubr.f32.gmra.mrb[0].mxu0 %v2191
    %v2193 = vpop.f32.mrb[0].mxu0
    %v2194 = vadd.f32 %v2120, %v2193
    %v2195 = vpop.f32.mrb[0].mxu0
    %2196 = vdwg.mxu0
    %2197 = vmatprep.subr.mxu0 0.0
    %v2198 = vand.u32 %v791, 4294901760
    %v2199 = vsub.f32 %v791, %v2198
    %v2200 = vand.u32 %v2199, 4294901760
    %2201 = vmatpush1.msra.mxu0 %v2200
    %2202 = vmatprep.subr.mxu0 0.0
    %2203 = vmatpush1.msra.mxu0 0.0
    %2204 = vmatprep.subr.mxu0 0.0
    %2205 = vmatpush1.msra.mxu0 0.0
    %2206 = vmatprep.subr.mxu0 0.0
    %2207 = vmatpush1.msra.mxu0 0.0
    %2208 = vmatprep.subr.mxu0 0.0
    %2209 = vmatpush1.msra.mxu0 0.0
    %2210 = vmatprep.subr.mxu0 0.0
    %2211 = vmatpush1.msra.mxu0 0.0
    %2212 = vmatprep.subr.mxu0 0.0
    %2213 = vmatpush1.msra.mxu0 0.0
    %2214 = vmatprep.subr.mxu0 0.0
    %2215 = vmatpush1.msra.mxu0 0.0
    %2216 = vmatprep.subr.mxu0 0.0
    %2217 = vmatpush1.msra.mxu0 0.0
    %2218 = vmatprep.subr.mxu0 0.0
    %2219 = vmatpush1.msra.mxu0 0.0
    %2220 = vmatprep.subr.mxu0 0.0
    %2221 = vmatpush1.msra.mxu0 0.0
    %2222 = vmatprep.subr.mxu0 0.0
    %2223 = vmatpush1.msra.mxu0 0.0
    %2224 = vmatprep.subr.mxu0 0.0
    %2225 = vmatpush1.msra.mxu0 0.0
    %2226 = vmatprep.subr.mxu0 0.0
    %2227 = vmatpush1.msra.mxu0 0.0
    %2228 = vmatprep.subr.mxu0 0.0
    %2229 = vmatpush1.msra.mxu0 0.0
    %2230 = vmatprep.subr.mxu0 0.0
    %2231 = vmatpush1.msra.mxu0 0.0
    %2232 = vmatprep.subr.mxu0 0.0
    %2233 = vmatpush1.msra.mxu0 0.0
    %2234 = vmatprep.subr.mxu0 0.0
    %2235 = vmatpush1.msra.mxu0 0.0
    %2236 = vmatprep.subr.mxu0 0.0
    %2237 = vmatpush1.msra.mxu0 0.0
    %2238 = vmatprep.subr.mxu0 0.0
    %2239 = vmatpush1.msra.mxu0 0.0
    %2240 = vmatprep.subr.mxu0 0.0
    %2241 = vmatpush1.msra.mxu0 0.0
    %2242 = vmatprep.subr.mxu0 0.0
    %2243 = vmatpush1.msra.mxu0 0.0
    %2244 = vmatprep.subr.mxu0 0.0
    %2245 = vmatpush1.msra.mxu0 0.0
    %2246 = vmatprep.subr.mxu0 0.0
    %2247 = vmatpush1.msra.mxu0 0.0
    %2248 = vmatprep.subr.mxu0 0.0
    %2249 = vmatpush1.msra.mxu0 0.0
    %2250 = vmatprep.subr.mxu0 0.0
    %2251 = vmatpush1.msra.mxu0 0.0
    %2252 = vmatprep.subr.mxu0 0.0
    %2253 = vmatpush1.msra.mxu0 0.0
    %2254 = vmatprep.subr.mxu0 0.0
    %2255 = vmatpush1.msra.mxu0 0.0
    %2256 = vmatprep.subr.mxu0 0.0
    %2257 = vmatpush1.msra.mxu0 0.0
    %2258 = vmatprep.subr.mxu0 0.0
    %2259 = vmatpush1.msra.mxu0 0.0
    %2260 = vmatprep.subr.mxu0 0.0
    %2261 = vmatpush1.msra.mxu0 0.0
    %2262 = vmatprep.subr.mxu0 0.0
    %2263 = vmatpush1.msra.mxu0 0.0
    %2264 = vmatprep.mubr.f32.mxu0 0.0
    %v2265 = vand.u32 %v1895, 4294901760
    %2266 = vmatmul.mubr.f32.gmra.mrb[0].mxu0 %v2265
    %v2267 = vpop.f32.mrb[0].mxu0
    %v2268 = vadd.f32 %v2194, %v2267
    %v2269 = vpop.f32.mrb[0].mxu0
    %2270 = vdwg.mxu0
    %2271 = vmatprep.subr.mxu0 0.0
    %v2272 = vand.u32 %v791, 4294901760
    %2273 = vmatpush1.msra.mxu0 %v2272
    %2274 = vmatprep.subr.mxu0 0.0
    %2275 = vmatpush1.msra.mxu0 0.0
    %2276 = vmatprep.subr.mxu0 0.0
    %2277 = vmatpush1.msra.mxu0 0.0
    %2278 = vmatprep.subr.mxu0 0.0
    %2279 = vmatpush1.msra.mxu0 0.0
    %2280 = vmatprep.subr.mxu0 0.0
    %2281 = vmatpush1.msra.mxu0 0.0
    %2282 = vmatprep.subr.mxu0 0.0
    %2283 = vmatpush1.msra.mxu0 0.0
    %2284 = vmatprep.subr.mxu0 0.0
    %2285 = vmatpush1.msra.mxu0 0.0
    %2286 = vmatprep.subr.mxu0 0.0
    %2287 = vmatpush1.msra.mxu0 0.0
    %2288 = vmatprep.subr.mxu0 0.0
    %2289 = vmatpush1.msra.mxu0 0.0
    %2290 = vmatprep.subr.mxu0 0.0
    %2291 = vmatpush1.msra.mxu0 0.0
    %2292 = vmatprep.subr.mxu0 0.0
    %2293 = vmatpush1.msra.mxu0 0.0
    %2294 = vmatprep.subr.mxu0 0.0
    %2295 = vmatpush1.msra.mxu0 0.0
    %2296 = vmatprep.subr.mxu0 0.0
    %2297 = vmatpush1.msra.mxu0 0.0
    %2298 = vmatprep.subr.mxu0 0.0
    %2299 = vmatpush1.msra.mxu0 0.0
    %2300 = vmatprep.subr.mxu0 0.0
    %2301 = vmatpush1.msra.mxu0 0.0
    %2302 = vmatprep.subr.mxu0 0.0
    %2303 = vmatpush1.msra.mxu0 0.0
    %2304 = vmatprep.subr.mxu0 0.0
    %2305 = vmatpush1.msra.mxu0 0.0
    %2306 = vmatprep.subr.mxu0 0.0
    %2307 = vmatpush1.msra.mxu0 0.0
    %2308 = vmatprep.subr.mxu0 0.0
    %2309 = vmatpush1.msra.mxu0 0.0
    %2310 = vmatprep.subr.mxu0 0.0
    %2311 = vmatpush1.msra.mxu0 0.0
    %2312 = vmatprep.subr.mxu0 0.0
    %2313 = vmatpush1.msra.mxu0 0.0
    %2314 = vmatprep.subr.mxu0 0.0
    %2315 = vmatpush1.msra.mxu0 0.0
    %2316 = vmatprep.subr.mxu0 0.0
    %2317 = vmatpush1.msra.mxu0 0.0
    %2318 = vmatprep.subr.mxu0 0.0
    %2319 = vmatpush1.msra.mxu0 0.0
    %2320 = vmatprep.subr.mxu0 0.0
    %2321 = vmatpush1.msra.mxu0 0.0
    %2322 = vmatprep.subr.mxu0 0.0
    %2323 = vmatpush1.msra.mxu0 0.0
    %2324 = vmatprep.subr.mxu0 0.0
    %2325 = vmatpush1.msra.mxu0 0.0
    %2326 = vmatprep.subr.mxu0 0.0
    %2327 = vmatpush1.msra.mxu0 0.0
    %2328 = vmatprep.subr.mxu0 0.0
    %2329 = vmatpush1.msra.mxu0 0.0
    %2330 = vmatprep.subr.mxu0 0.0
    %2331 = vmatpush1.msra.mxu0 0.0
    %2332 = vmatprep.subr.mxu0 0.0
    %2333 = vmatpush1.msra.mxu0 0.0
    %2334 = vmatprep.subr.mxu0 0.0
    %2335 = vmatpush1.msra.mxu0 0.0
    %2336 = vmatprep.mubr.f32.mxu0 0.0
    %v2337 = vand.u32 %v1895, 4294901760
    %2338 = vmatmul.mubr.f32.gmra.mrb[0].mxu0 %v2337
    %v2339 = vpop.f32.mrb[0].mxu0
    %v2340 = vadd.f32 %v2268, %v2339
    %v2341 = vpop.f32.mrb[0].mxu0
    %2342 = vdwg.mxu0
    %v2343 = vmul.f32 %v1239, %v2340
    %v2344 = vstv %s19
    %v2345 = vadd.f32 %v2343, %v2344
    %2346 = vst [vmem:[#allocation4] sm:$0xf] %v2345
    // Predicated region
    $region14: #{tpu_custom_call.1} parent=1 // pred_check
      _
    $region15: #{tpu_custom_call.1} parent=1 // pred_check_branch
      %2348 = sbr.rel (0) target = $region17
    $region16: #{tpu_custom_call.1} parent=1 // pred_region
      %s2350 = ssub.s32 64, 64
      %2351 = vsyncadd [#allocation5], %s2350
      %s2353 = sshll.u32 [#allocation4], 4
      %s2354 = int_to_ptr.vmem [resolvable:$true] %s2353
      %2356 = dma.vmem_to_hbm [thread:$0]  %s2354, 64, %s3, [#allocation5]
    $region17: #{tpu_custom_call.1} parent=1 // pred_fallthru
      _
    // Predicated region
    $region18: #{tpu_custom_call.1} parent=1 // pred_check
      _
    $region19: #{tpu_custom_call.1} parent=1 // pred_check_branch
      %2358 = sbr.rel (0) target = $region21
    $region20: #{tpu_custom_call.1} parent=1 // pred_region
      %2359 = dma.done [#allocation5], 64
    $region21: #{tpu_custom_call.1} parent=1 // pred_fallthru
      _
    %2360 = vsyncpa [#allocation5], 1

</llo_original>
